<compile_context>
chip_gen: v7x
topology: tpu7x:2x2x1
jax: 0.10.0
libtpu: 0.0.40
codegen_flags: <defaults>
</compile_context>

<pallas_src>
import functools

import jax
import jax.numpy as jnp
from jax.experimental import pallas as pl
from jax.experimental.pallas import tpu as pltpu


def _mha_flash_kernel(xq_ref, xk_ref, w_ref, o_ref, acc_ref, m_ref, l_ref, *,
                      n_heads, head_dim, seq_len, block_k, dot_dtype):
    # xq_ref : (1, D, TQ)  query-tile slab of x (mxu dtype)
    # xk_ref : (1, D, TK)  key-tile   slab of x (mxu dtype)
    # w_ref  : (3D, D)     fused QKV weights; row r = (n*H + h)*Dh + dh
    # o_ref  : (1, D, TQ)  output block (revisited across the key axis)
    # acc_ref: (D, TQ) f32 running (unnormalized) output accumulator
    # m_ref  : (H, 1, TQ)  running per-head row max
    # l_ref  : (H, 1, TQ)  running per-head softmax denominator
    d_model = n_heads * head_dim
    ki = pl.program_id(2)
    nk = pl.num_programs(2)

    # ---- init online-softmax state at the first key tile --------------------
    @pl.when(ki == 0)
    def _():
        m_ref[...] = jnp.full(m_ref.shape, -jnp.inf, dtype=m_ref.dtype)
        l_ref[...] = jnp.zeros(l_ref.shape, dtype=l_ref.dtype)
        acc_ref[...] = jnp.zeros(acc_ref.shape, dtype=acc_ref.dtype)

    xq = xq_ref[0]                     # (D, TQ)
    xk = xk_ref[0]                     # (D, TK)
    w = w_ref[...]                     # (3D, D)
    tq = xq.shape[-1]
    tk = xk.shape[-1]

    # ---- fused projections (wide MXU passes), f32 accumulation --------------
    scale = jnp.float32(1.0 / (head_dim ** 0.5))
    # Q only for this query tile; K and V for this key tile, in one (2D,D) dot.
    q = jnp.dot(w[:d_model], xq, preferred_element_type=jnp.float32) * scale
    kv = jnp.dot(w[d_model:], xk, preferred_element_type=jnp.float32)
    k = kv[:d_model]                   # (D, TK) f32
    v = kv[d_model:]                   # (D, TK) f32

    # Mask for zero-padded key positions (global key index >= true seq_len).
    key_idx = jax.lax.broadcasted_iota(jnp.int32, (tk, tq), 0) + ki * block_k
    key_mask = key_idx < seq_len

    acc_prev = acc_ref[...]            # one wide (D, TQ) load
    acc_new = []
    # Static per-head loop: H is small here.
    # TODO(synk): switch to lax.fori_loop(..., unroll=k) if n_heads grows
    # beyond ~8-16 so vreg live ranges stay bounded.
    for h in range(n_heads):
        lo = h * head_dim
        hi = lo + head_dim
        q_h = q[lo:hi]                 # (Dh, TQ) f32
        k_h = k[lo:hi]                 # (Dh, TK) f32
        v_h = v[lo:hi]                 # (Dh, TK) f32

        # scores in (keys, queries) orientation; contraction over head_dim is
        # expressed with dot_general -> no XLU transpose of q or k.
        s = jax.lax.dot_general(k_h, q_h, (((0,), (0,)), ((), ())),
                                preferred_element_type=jnp.float32)  # (TK, TQ)
        s = jnp.where(key_mask, s, jnp.float32(-1e30))

        # Online-softmax update; all stats are (1, TQ) rows which broadcast
        # directly over the (Dh, TQ) accumulator slabs (no transposes).
        m_prev = m_ref[h]                                            # (1, TQ)
        l_prev = l_ref[h]                                            # (1, TQ)
        m_new = jnp.maximum(m_prev, jnp.max(s, axis=0, keepdims=True))
        alpha = jnp.exp(m_prev - m_new)
        p = jnp.exp(s - m_new)                                       # (TK, TQ)
        l_ref[h] = alpha * l_prev + jnp.sum(p, axis=0, keepdims=True)
        m_ref[h] = m_new

        # out_h[dh, tq] = sum_tk v_h[dh, tk] * p[tk, tq]; bf16 MXU inputs,
        # f32 accumulation.
        o_h = jnp.dot(v_h.astype(dot_dtype), p.astype(dot_dtype),
                      preferred_element_type=jnp.float32)            # (Dh, TQ)
        acc_new.append(acc_prev[lo:hi] * alpha + o_h)

    # One full-width (D, TQ) store instead of H narrow Dh-row stores.
    acc_ref[...] = jnp.concatenate(acc_new, axis=0)

    # ---- finalize: normalize and write the whole (D, TQ) block once ---------
    @pl.when(ki == nk - 1)
    def _():
        inv = pl.reciprocal(l_ref[...], approx=True)                 # (H,1,TQ)
        out = jnp.concatenate(
            [acc_ref[h * head_dim:(h + 1) * head_dim] * inv[h]
             for h in range(n_heads)],
            axis=0)                                                  # (D, TQ)
        o_ref[0] = out.astype(o_ref.dtype)


def mha_forward(x, qkv, n_heads, *, mxu_dtype=jnp.bfloat16,
                block_q=256, block_k=512):
    """x: (B, D, T) f32; qkv: (3, H, D, D//H) f32 -> (B, D, T) f32."""
    B, D, T = x.shape
    H = n_heads
    Dh = D // H
    assert qkv.shape == (3, H, D, Dh)
    out_dtype = x.dtype

    # Lane-dense time axis: pad T up to a multiple of 128.
    T_pad = max(128, ((T + 127) // 128) * 128)
    tq = block_q if T_pad % block_q == 0 else 128     # query tile (lane dim)
    tk = block_k if T_pad % block_k == 0 else 128     # key tile   (sublane dim)
    nq = T_pad // tq
    nk = T_pad // tk
    if T_pad != T:
        x = jnp.pad(x, ((0, 0), (0, 0), (0, T_pad - T)))

    # One-time weight re-layout: w_fused[(n*H + h)*Dh + dh, d] = qkv[n, h, d, dh].
    w_fused = jnp.transpose(qkv, (0, 1, 3, 2)).reshape(3 * D, D)

    # bf16 MXU inputs (f32 accumulation + f32 softmax inside the kernel).
    x_in = x.astype(mxu_dtype)
    w_in = w_fused.astype(mxu_dtype)

    kernel = functools.partial(
        _mha_flash_kernel, n_heads=H, head_dim=Dh, seq_len=T,
        block_k=tk, dot_dtype=mxu_dtype)

    in_bytes = jnp.dtype(mxu_dtype).itemsize
    cost = pl.CostEstimate(
        flops=B * nq * nk * (2 * D * D * tq + 4 * D * D * tk + 4 * D * tq * tk),
        transcendentals=B * nq * nk * H * tq * (tk + 2),
        bytes_accessed=(B * nq * nk * (D * tq + D * tk + 3 * D * D) * in_bytes
                        + B * D * T_pad * 4),
    )

    out_padded = pl.pallas_call(
        kernel,
        out_shape=jax.ShapeDtypeStruct((B, D, T_pad), out_dtype),
        grid_spec=pltpu.PrefetchScalarGridSpec(
            num_scalar_prefetch=0,
            grid=(B, nq, nk),                      # key axis last (reduction)
            in_specs=[
                pl.BlockSpec((1, D, tq), lambda b, qi, ki: (b, 0, qi)),
                pl.BlockSpec((1, D, tk), lambda b, qi, ki: (b, 0, ki)),
                # Grid-invariant weights: the block index never changes so the
                # pipeline does not re-fetch it.  At large D, additionally
                # single-buffer it (pipeline_mode=pl.Buffered(1)) to save the
                # second 3*D*D VMEM copy.
                pl.BlockSpec((3 * D, D), lambda b, qi, ki: (0, 0)),
            ],
            out_specs=pl.BlockSpec((1, D, tq), lambda b, qi, ki: (b, 0, qi)),
            scratch_shapes=[
                pltpu.VMEM((D, tq), jnp.float32),     # output accumulator
                pltpu.VMEM((H, 1, tq), jnp.float32),  # running max per head
                pltpu.VMEM((H, 1, tq), jnp.float32),  # running sum per head
            ],
        ),
        compiler_params=pltpu.CompilerParams(
            dimension_semantics=("parallel", "parallel", "arbitrary"),
            vmem_limit_bytes=64 * 1024 * 1024,        # explicit VMEM budget
        ),
        cost_estimate=cost,
    )(x_in, x_in, w_in)

    return out_padded[:, :, :T]


def mha_reference(x, qkv, n_heads):
    """Pure-JAX reference mirroring the PyTorch forward exactly."""
    B, D, T = x.shape
    H = n_heads
    Dh = D // H
    proj = jnp.einsum("bdt,nhdD->nbhtD", x, qkv)        # (3, B, H, T, Dh)
    q, k, v = proj[0], proj[1], proj[2]
    attn = (q @ jnp.swapaxes(k, -1, -2)) / jnp.sqrt(jnp.float32(Dh))
    attn = jax.nn.softmax(attn, axis=-1)
    out = jnp.einsum("bhtT,bhTD->bhDt", attn, v)        # (B, H, Dh, T)
    return out.reshape(B, D, T)


if __name__ == "__main__":
    # Small deterministic setup consistent with the module.
    B, D_EMB, T = 2, 32, 8
    N_HEADS = 4
    SCALE = 0.1

    key = jax.random.PRNGKey(0)
    kx, kw = jax.random.split(key)
    x = jax.random.normal(kx, (B, D_EMB, T), dtype=jnp.float32)
    qkv = jax.random.normal(
        kw, (3, N_HEADS, D_EMB, D_EMB // N_HEADS), dtype=jnp.float32
    ) * SCALE

    ref = mha_reference(x, qkv, N_HEADS)

    # f32 MXU path: matches the PyTorch module up to the approximate EUP
    # reciprocal used in the softmax normalization.
    out_f32 = jax.block_until_ready(
        mha_forward(x, qkv, N_HEADS, mxu_dtype=jnp.float32))
    assert out_f32.shape == (B, D_EMB, T)
    err32 = float(jnp.max(jnp.abs(out_f32 - ref)))
    assert jnp.allclose(out_f32, ref, atol=2e-2, rtol=2e-2), (
        f"f32 path mismatch vs reference (max abs err {err32:.2e})")

    # Default bf16-MXU path (review: ~2x MXU throughput on v6e/v7x, half the
    # HBM bytes); accumulation and softmax stay f32, so only the bf16 input
    # rounding loosens the tolerance.
    out_bf16 = jax.block_until_ready(mha_forward(x, qkv, N_HEADS))
    assert out_bf16.shape == (B, D_EMB, T)
    err16 = float(jnp.max(jnp.abs(out_bf16 - ref)))
    assert jnp.allclose(out_bf16, ref, atol=5e-2, rtol=5e-2), (
        f"bf16 path mismatch vs reference (max abs err {err16:.2e})")

    print("KERNEL_OK")
</pallas_src>

<mosaic_0001>
module attributes {stable_mosaic.version = 11 : i64} {
  func.func @_mha_flash_kernel(%arg0: i32, %arg1: i32, %arg2: i32, %arg3: memref<1x32x128xf32, #tpu.memory_space<vmem>>, %arg4: memref<1x32x128xf32, #tpu.memory_space<vmem>>, %arg5: memref<96x32xf32, #tpu.memory_space<vmem>>, %arg6: memref<1x32x128xf32, #tpu.memory_space<vmem>>, %arg7: memref<32x128xf32, #tpu.memory_space<vmem>>, %arg8: memref<4x1x128xf32, #tpu.memory_space<vmem>>, %arg9: memref<4x1x128xf32, #tpu.memory_space<vmem>>) attributes {dimension_semantics = [#tpu.dimension_semantics<parallel>, #tpu.dimension_semantics<parallel>, #tpu.dimension_semantics<arbitrary>], iteration_bounds = array<i64: 2, 1, 1>, scalar_prefetch = 0 : i64, scratch_operands = 3 : i64, tpu.core_type = #tpu.core_type<tc>, window_params = [{transform_indices = @transform_0, window_bounds = array<i64: 1, 32, 128>}, {transform_indices = @transform_1, window_bounds = array<i64: 1, 32, 128>}, {pipeline_mode = #tpu.pipeline_mode<synchronous>, transform_indices = @transform_2, window_bounds = array<i64: 96, 32>}, {transform_indices = @transform_3, window_bounds = array<i64: 1, 32, 128>}]} {
    %c0_i32 = arith.constant 0 : i32
    %0 = arith.cmpi eq, %arg2, %c0_i32 : i32
    %1 = arith.extui %0 : i1 to i32
    %c0_i32_0 = arith.constant 0 : i32
    %2 = arith.cmpi ne, %1, %c0_i32_0 : i32
    scf.if %2 {
      %cst_81 = arith.constant 0xFF800000 : f32
      %160 = vector.broadcast %cst_81 : f32 to vector<4x1x128xf32>
      %c0_82 = arith.constant 0 : index
      %c0_83 = arith.constant 0 : index
      %c0_84 = arith.constant 0 : index
      %161 = vector.load %arg8[%c0_82, %c0_83, %c0_84] : memref<4x1x128xf32, #tpu.memory_space<vmem>>, vector<4x1x128xf32>
      tpu.vector_store %arg8[%c0_82, %c0_83, %c0_84], %160 {strides = array<i32>} : memref<4x1x128xf32, #tpu.memory_space<vmem>>, vector<4x1x128xf32>,
      %cst_85 = arith.constant 0.000000e+00 : f32
      %162 = vector.broadcast %cst_85 : f32 to vector<4x1x128xf32>
      %c0_86 = arith.constant 0 : index
      %c0_87 = arith.constant 0 : index
      %c0_88 = arith.constant 0 : index
      %163 = vector.load %arg9[%c0_86, %c0_87, %c0_88] : memref<4x1x128xf32, #tpu.memory_space<vmem>>, vector<4x1x128xf32>
      tpu.vector_store %arg9[%c0_86, %c0_87, %c0_88], %162 {strides = array<i32>} : memref<4x1x128xf32, #tpu.memory_space<vmem>>, vector<4x1x128xf32>,
      %cst_89 = arith.constant 0.000000e+00 : f32
      %164 = vector.broadcast %cst_89 : f32 to vector<32x128xf32>
      %c0_90 = arith.constant 0 : index
      %c0_91 = arith.constant 0 : index
      %165 = vector.load %arg7[%c0_90, %c0_91] : memref<32x128xf32, #tpu.memory_space<vmem>>, vector<32x128xf32>
      tpu.vector_store %arg7[%c0_90, %c0_91], %164 {strides = array<i32>} : memref<32x128xf32, #tpu.memory_space<vmem>>, vector<32x128xf32>,
    } else {
    }
    %c0 = arith.constant 0 : index
    %c0_1 = arith.constant 0 : index
    %c0_2 = arith.constant 0 : index
    %3 = vector.load %arg3[%c0, %c0_1, %c0_2] : memref<1x32x128xf32, #tpu.memory_space<vmem>>, vector<1x32x128xf32>
    %4 = vector.shape_cast %3 : vector<1x32x128xf32> to vector<32x128xf32>
    %c0_3 = arith.constant 0 : index
    %c0_4 = arith.constant 0 : index
    %c0_5 = arith.constant 0 : index
    %5 = vector.load %arg4[%c0_3, %c0_4, %c0_5] : memref<1x32x128xf32, #tpu.memory_space<vmem>>, vector<1x32x128xf32>
    %6 = vector.shape_cast %5 : vector<1x32x128xf32> to vector<32x128xf32>
    %c0_6 = arith.constant 0 : index
    %c0_7 = arith.constant 0 : index
    %7 = vector.load %arg5[%c0_6, %c0_7] : memref<96x32xf32, #tpu.memory_space<vmem>>, vector<96x32xf32>
    %8 = vector.extract_strided_slice %7 {offsets = [0, 0], sizes = [32, 32], strides = [1, 1]} : vector<96x32xf32> to vector<32x32xf32>
    %cst = arith.constant dense<0.000000e+00> : vector<32x128xf32>
    %9 = tpu.matmul %8, %4, %cst {dimension_numbers = #tpu.dot_dimension_numbers<[1], [0], [0], [1], [0, 0, 1, 1], [], []>} : vector<32x32xf32>, vector<32x128xf32>, vector<32x128xf32> -> vector<32x128xf32>
    %cst_8 = arith.constant 0.353553385 : f32
    %10 = vector.broadcast %cst_8 : f32 to vector<32x128xf32>
    %11 = arith.mulf %9, %10 : vector<32x128xf32>
    %12 = vector.extract_strided_slice %7 {offsets = [32, 0], sizes = [64, 32], strides = [1, 1]} : vector<96x32xf32> to vector<64x32xf32>
    %cst_9 = arith.constant dense<0.000000e+00> : vector<64x128xf32>
    %13 = tpu.matmul %12, %6, %cst_9 {dimension_numbers = #tpu.dot_dimension_numbers<[1], [0], [0], [1], [0, 0, 1, 1], [], []>} : vector<64x32xf32>, vector<32x128xf32>, vector<64x128xf32> -> vector<64x128xf32>
    %14 = vector.extract_strided_slice %13 {offsets = [0, 0], sizes = [32, 128], strides = [1, 1]} : vector<64x128xf32> to vector<32x128xf32>
    %15 = vector.extract_strided_slice %13 {offsets = [32, 0], sizes = [32, 128], strides = [1, 1]} : vector<64x128xf32> to vector<32x128xf32>
    %16 = tpu.iota {dimensions = array<i32: 0>} : vector<128x128xi32>
    %c128_i32 = arith.constant 128 : i32
    %17 = arith.muli %arg2, %c128_i32 : i32
    %18 = vector.broadcast %17 : i32 to vector<128x128xi32>
    %19 = arith.addi %16, %18 : vector<128x128xi32>
    %c8_i32 = arith.constant 8 : i32
    %20 = vector.broadcast %c8_i32 : i32 to vector<128x128xi32>
    %21 = arith.cmpi slt, %19, %20 : vector<128x128xi32>
    %c0_10 = arith.constant 0 : index
    %c0_11 = arith.constant 0 : index
    %22 = vector.load %arg7[%c0_10, %c0_11] : memref<32x128xf32, #tpu.memory_space<vmem>>, vector<32x128xf32>
    %23 = vector.extract_strided_slice %11 {offsets = [0, 0], sizes = [8, 128], strides = [1, 1]} : vector<32x128xf32> to vector<8x128xf32>
    %24 = vector.extract_strided_slice %14 {offsets = [0, 0], sizes = [8, 128], strides = [1, 1]} : vector<32x128xf32> to vector<8x128xf32>
    %25 = vector.extract_strided_slice %15 {offsets = [0, 0], sizes = [8, 128], strides = [1, 1]} : vector<32x128xf32> to vector<8x128xf32>
    %cst_12 = arith.constant dense<0.000000e+00> : vector<128x128xf32>
    %26 = tpu.matmul %24, %23, %cst_12 {dimension_numbers = #tpu.dot_dimension_numbers<[0], [0], [1], [1], [0, 1, 1, 1], [], []>} : vector<8x128xf32>, vector<8x128xf32>, vector<128x128xf32> -> vector<128x128xf32>
    %cst_13 = arith.constant -1.000000e+30 : f32
    %27 = vector.broadcast %cst_13 : f32 to vector<128x128xf32>
    %28 = arith.select %21, %26, %27 : vector<128x128xi1>, vector<128x128xf32>
    %c0_14 = arith.constant 0 : index
    %c0_15 = arith.constant 0 : index
    %c0_16 = arith.constant 0 : index
    %29 = vector.load %arg8[%c0_14, %c0_15, %c0_16] : memref<4x1x128xf32, #tpu.memory_space<vmem>>, vector<1x1x128xf32>
    %30 = vector.shape_cast %29 : vector<1x1x128xf32> to vector<1x128xf32>
    %c0_17 = arith.constant 0 : index
    %c0_18 = arith.constant 0 : index
    %c0_19 = arith.constant 0 : index
    %31 = vector.load %arg9[%c0_17, %c0_18, %c0_19] : memref<4x1x128xf32, #tpu.memory_space<vmem>>, vector<1x1x128xf32>
    %32 = vector.shape_cast %31 : vector<1x1x128xf32> to vector<1x128xf32>
    %cst_20 = arith.constant dense<0xFF800000> : vector<128xf32>
    %33 = vector.multi_reduction <maximumf>, %28, %cst_20 [0] : vector<128x128xf32> to vector<128xf32>
    %34 = vector.shape_cast %33 : vector<128xf32> to vector<1x128xf32>
    %35 = arith.maximumf %30, %34 : vector<1x128xf32>
    %36 = arith.subf %30, %35 : vector<1x128xf32>
    %37 = math.exp %36 : vector<1x128xf32>
    %38 = vector.broadcast %35 : vector<1x128xf32> to vector<128x128xf32>
    %39 = arith.subf %28, %38 : vector<128x128xf32>
    %40 = math.exp %39 : vector<128x128xf32>
    %41 = arith.mulf %37, %32 : vector<1x128xf32>
    %cst_21 = arith.constant dense<0.000000e+00> : vector<128xf32>
    %42 = vector.multi_reduction <add>, %40, %cst_21 [0] : vector<128x128xf32> to vector<128xf32>
    %43 = vector.shape_cast %42 : vector<128xf32> to vector<1x128xf32>
    %44 = arith.addf %41, %43 : vector<1x128xf32>
    %c0_22 = arith.constant 0 : index
    %c0_23 = arith.constant 0 : index
    %c0_24 = arith.constant 0 : index
    %45 = vector.load %arg9[%c0_22, %c0_23, %c0_24] : memref<4x1x128xf32, #tpu.memory_space<vmem>>, vector<1x1x128xf32>
    %46 = vector.shape_cast %45 : vector<1x1x128xf32> to vector<1x128xf32>
    %47 = vector.shape_cast %44 : vector<1x128xf32> to vector<1x1x128xf32>
    tpu.vector_store %arg9[%c0_22, %c0_23, %c0_24], %47 {strides = array<i32>} : memref<4x1x128xf32, #tpu.memory_space<vmem>>, vector<1x1x128xf32>,
    %c0_25 = arith.constant 0 : index
    %c0_26 = arith.constant 0 : index
    %c0_27 = arith.constant 0 : index
    %48 = vector.load %arg8[%c0_25, %c0_26, %c0_27] : memref<4x1x128xf32, #tpu.memory_space<vmem>>, vector<1x1x128xf32>
    %49 = vector.shape_cast %48 : vector<1x1x128xf32> to vector<1x128xf32>
    %50 = vector.shape_cast %35 : vector<1x128xf32> to vector<1x1x128xf32>
    tpu.vector_store %arg8[%c0_25, %c0_26, %c0_27], %50 {strides = array<i32>} : memref<4x1x128xf32, #tpu.memory_space<vmem>>, vector<1x1x128xf32>,
    %cst_28 = arith.constant dense<0.000000e+00> : vector<8x128xf32>
    %51 = tpu.matmul %25, %40, %cst_28 {dimension_numbers = #tpu.dot_dimension_numbers<[1], [0], [0], [1], [0, 0, 1, 1], [], []>} : vector<8x128xf32>, vector<128x128xf32>, vector<8x128xf32> -> vector<8x128xf32>
    %52 = vector.extract_strided_slice %22 {offsets = [0, 0], sizes = [8, 128], strides = [1, 1]} : vector<32x128xf32> to vector<8x128xf32>
    %53 = vector.broadcast %37 : vector<1x128xf32> to vector<8x128xf32>
    %54 = arith.mulf %52, %53 : vector<8x128xf32>
    %55 = arith.addf %54, %51 : vector<8x128xf32>
    %56 = vector.extract_strided_slice %11 {offsets = [8, 0], sizes = [8, 128], strides = [1, 1]} : vector<32x128xf32> to vector<8x128xf32>
    %57 = vector.extract_strided_slice %14 {offsets = [8, 0], sizes = [8, 128], strides = [1, 1]} : vector<32x128xf32> to vector<8x128xf32>
    %58 = vector.extract_strided_slice %15 {offsets = [8, 0], sizes = [8, 128], strides = [1, 1]} : vector<32x128xf32> to vector<8x128xf32>
    %cst_29 = arith.constant dense<0.000000e+00> : vector<128x128xf32>
    %59 = tpu.matmul %57, %56, %cst_29 {dimension_numbers = #tpu.dot_dimension_numbers<[0], [0], [1], [1], [0, 1, 1, 1], [], []>} : vector<8x128xf32>, vector<8x128xf32>, vector<128x128xf32> -> vector<128x128xf32>
    %cst_30 = arith.constant -1.000000e+30 : f32
    %60 = vector.broadcast %cst_30 : f32 to vector<128x128xf32>
    %61 = arith.select %21, %59, %60 : vector<128x128xi1>, vector<128x128xf32>
    %c1 = arith.constant 1 : index
    %c0_31 = arith.constant 0 : index
    %c0_32 = arith.constant 0 : index
    %62 = vector.load %arg8[%c1, %c0_31, %c0_32] : memref<4x1x128xf32, #tpu.memory_space<vmem>>, vector<1x1x128xf32>
    %63 = vector.shape_cast %62 : vector<1x1x128xf32> to vector<1x128xf32>
    %c1_33 = arith.constant 1 : index
    %c0_34 = arith.constant 0 : index
    %c0_35 = arith.constant 0 : index
    %64 = vector.load %arg9[%c1_33, %c0_34, %c0_35] : memref<4x1x128xf32, #tpu.memory_space<vmem>>, vector<1x1x128xf32>
    %65 = vector.shape_cast %64 : vector<1x1x128xf32> to vector<1x128xf32>
    %cst_36 = arith.constant dense<0xFF800000> : vector<128xf32>
    %66 = vector.multi_reduction <maximumf>, %61, %cst_36 [0] : vector<128x128xf32> to vector<128xf32>
    %67 = vector.shape_cast %66 : vector<128xf32> to vector<1x128xf32>
    %68 = arith.maximumf %63, %67 : vector<1x128xf32>
    %69 = arith.subf %63, %68 : vector<1x128xf32>
    %70 = math.exp %69 : vector<1x128xf32>
    %71 = vector.broadcast %68 : vector<1x128xf32> to vector<128x128xf32>
    %72 = arith.subf %61, %71 : vector<128x128xf32>
    %73 = math.exp %72 : vector<128x128xf32>
    %74 = arith.mulf %70, %65 : vector<1x128xf32>
    %cst_37 = arith.constant dense<0.000000e+00> : vector<128xf32>
    %75 = vector.multi_reduction <add>, %73, %cst_37 [0] : vector<128x128xf32> to vector<128xf32>
    %76 = vector.shape_cast %75 : vector<128xf32> to vector<1x128xf32>
    %77 = arith.addf %74, %76 : vector<1x128xf32>
    %c1_38 = arith.constant 1 : index
    %c0_39 = arith.constant 0 : index
    %c0_40 = arith.constant 0 : index
    %78 = vector.load %arg9[%c1_38, %c0_39, %c0_40] : memref<4x1x128xf32, #tpu.memory_space<vmem>>, vector<1x1x128xf32>
    %79 = vector.shape_cast %78 : vector<1x1x128xf32> to vector<1x128xf32>
    %80 = vector.shape_cast %77 : vector<1x128xf32> to vector<1x1x128xf32>
    tpu.vector_store %arg9[%c1_38, %c0_39, %c0_40], %80 {strides = array<i32>} : memref<4x1x128xf32, #tpu.memory_space<vmem>>, vector<1x1x128xf32>,
    %c1_41 = arith.constant 1 : index
    %c0_42 = arith.constant 0 : index
    %c0_43 = arith.constant 0 : index
    %81 = vector.load %arg8[%c1_41, %c0_42, %c0_43] : memref<4x1x128xf32, #tpu.memory_space<vmem>>, vector<1x1x128xf32>
    %82 = vector.shape_cast %81 : vector<1x1x128xf32> to vector<1x128xf32>
    %83 = vector.shape_cast %68 : vector<1x128xf32> to vector<1x1x128xf32>
    tpu.vector_store %arg8[%c1_41, %c0_42, %c0_43], %83 {strides = array<i32>} : memref<4x1x128xf32, #tpu.memory_space<vmem>>, vector<1x1x128xf32>,
    %cst_44 = arith.constant dense<0.000000e+00> : vector<8x128xf32>
    %84 = tpu.matmul %58, %73, %cst_44 {dimension_numbers = #tpu.dot_dimension_numbers<[1], [0], [0], [1], [0, 0, 1, 1], [], []>} : vector<8x128xf32>, vector<128x128xf32>, vector<8x128xf32> -> vector<8x128xf32>
    %85 = vector.extract_strided_slice %22 {offsets = [8, 0], sizes = [8, 128], strides = [1, 1]} : vector<32x128xf32> to vector<8x128xf32>
    %86 = vector.broadcast %70 : vector<1x128xf32> to vector<8x128xf32>
    %87 = arith.mulf %85, %86 : vector<8x128xf32>
    %88 = arith.addf %87, %84 : vector<8x128xf32>
    %89 = vector.extract_strided_slice %11 {offsets = [16, 0], sizes = [8, 128], strides = [1, 1]} : vector<32x128xf32> to vector<8x128xf32>
    %90 = vector.extract_strided_slice %14 {offsets = [16, 0], sizes = [8, 128], strides = [1, 1]} : vector<32x128xf32> to vector<8x128xf32>
    %91 = vector.extract_strided_slice %15 {offsets = [16, 0], sizes = [8, 128], strides = [1, 1]} : vector<32x128xf32> to vector<8x128xf32>
    %cst_45 = arith.constant dense<0.000000e+00> : vector<128x128xf32>
    %92 = tpu.matmul %90, %89, %cst_45 {dimension_numbers = #tpu.dot_dimension_numbers<[0], [0], [1], [1], [0, 1, 1, 1], [], []>} : vector<8x128xf32>, vector<8x128xf32>, vector<128x128xf32> -> vector<128x128xf32>
    %cst_46 = arith.constant -1.000000e+30 : f32
    %93 = vector.broadcast %cst_46 : f32 to vector<128x128xf32>
    %94 = arith.select %21, %92, %93 : vector<128x128xi1>, vector<128x128xf32>
    %c2 = arith.constant 2 : index
    %c0_47 = arith.constant 0 : index
    %c0_48 = arith.constant 0 : index
    %95 = vector.load %arg8[%c2, %c0_47, %c0_48] : memref<4x1x128xf32, #tpu.memory_space<vmem>>, vector<1x1x128xf32>
    %96 = vector.shape_cast %95 : vector<1x1x128xf32> to vector<1x128xf32>
    %c2_49 = arith.constant 2 : index
    %c0_50 = arith.constant 0 : index
    %c0_51 = arith.constant 0 : index
    %97 = vector.load %arg9[%c2_49, %c0_50, %c0_51] : memref<4x1x128xf32, #tpu.memory_space<vmem>>, vector<1x1x128xf32>
    %98 = vector.shape_cast %97 : vector<1x1x128xf32> to vector<1x128xf32>
    %cst_52 = arith.constant dense<0xFF800000> : vector<128xf32>
    %99 = vector.multi_reduction <maximumf>, %94, %cst_52 [0] : vector<128x128xf32> to vector<128xf32>
    %100 = vector.shape_cast %99 : vector<128xf32> to vector<1x128xf32>
    %101 = arith.maximumf %96, %100 : vector<1x128xf32>
    %102 = arith.subf %96, %101 : vector<1x128xf32>
    %103 = math.exp %102 : vector<1x128xf32>
    %104 = vector.broadcast %101 : vector<1x128xf32> to vector<128x128xf32>
    %105 = arith.subf %94, %104 : vector<128x128xf32>
    %106 = math.exp %105 : vector<128x128xf32>
    %107 = arith.mulf %103, %98 : vector<1x128xf32>
    %cst_53 = arith.constant dense<0.000000e+00> : vector<128xf32>
    %108 = vector.multi_reduction <add>, %106, %cst_53 [0] : vector<128x128xf32> to vector<128xf32>
    %109 = vector.shape_cast %108 : vector<128xf32> to vector<1x128xf32>
    %110 = arith.addf %107, %109 : vector<1x128xf32>
    %c2_54 = arith.constant 2 : index
    %c0_55 = arith.constant 0 : index
    %c0_56 = arith.constant 0 : index
    %111 = vector.load %arg9[%c2_54, %c0_55, %c0_56] : memref<4x1x128xf32, #tpu.memory_space<vmem>>, vector<1x1x128xf32>
    %112 = vector.shape_cast %111 : vector<1x1x128xf32> to vector<1x128xf32>
    %113 = vector.shape_cast %110 : vector<1x128xf32> to vector<1x1x128xf32>
    tpu.vector_store %arg9[%c2_54, %c0_55, %c0_56], %113 {strides = array<i32>} : memref<4x1x128xf32, #tpu.memory_space<vmem>>, vector<1x1x128xf32>,
    %c2_57 = arith.constant 2 : index
    %c0_58 = arith.constant 0 : index
    %c0_59 = arith.constant 0 : index
    %114 = vector.load %arg8[%c2_57, %c0_58, %c0_59] : memref<4x1x128xf32, #tpu.memory_space<vmem>>, vector<1x1x128xf32>
    %115 = vector.shape_cast %114 : vector<1x1x128xf32> to vector<1x128xf32>
    %116 = vector.shape_cast %101 : vector<1x128xf32> to vector<1x1x128xf32>
    tpu.vector_store %arg8[%c2_57, %c0_58, %c0_59], %116 {strides = array<i32>} : memref<4x1x128xf32, #tpu.memory_space<vmem>>, vector<1x1x128xf32>,
    %cst_60 = arith.constant dense<0.000000e+00> : vector<8x128xf32>
    %117 = tpu.matmul %91, %106, %cst_60 {dimension_numbers = #tpu.dot_dimension_numbers<[1], [0], [0], [1], [0, 0, 1, 1], [], []>} : vector<8x128xf32>, vector<128x128xf32>, vector<8x128xf32> -> vector<8x128xf32>
    %118 = vector.extract_strided_slice %22 {offsets = [16, 0], sizes = [8, 128], strides = [1, 1]} : vector<32x128xf32> to vector<8x128xf32>
    %119 = vector.broadcast %103 : vector<1x128xf32> to vector<8x128xf32>
    %120 = arith.mulf %118, %119 : vector<8x128xf32>
    %121 = arith.addf %120, %117 : vector<8x128xf32>
    %122 = vector.extract_strided_slice %11 {offsets = [24, 0], sizes = [8, 128], strides = [1, 1]} : vector<32x128xf32> to vector<8x128xf32>
    %123 = vector.extract_strided_slice %14 {offsets = [24, 0], sizes = [8, 128], strides = [1, 1]} : vector<32x128xf32> to vector<8x128xf32>
    %124 = vector.extract_strided_slice %15 {offsets = [24, 0], sizes = [8, 128], strides = [1, 1]} : vector<32x128xf32> to vector<8x128xf32>
    %cst_61 = arith.constant dense<0.000000e+00> : vector<128x128xf32>
    %125 = tpu.matmul %123, %122, %cst_61 {dimension_numbers = #tpu.dot_dimension_numbers<[0], [0], [1], [1], [0, 1, 1, 1], [], []>} : vector<8x128xf32>, vector<8x128xf32>, vector<128x128xf32> -> vector<128x128xf32>
    %cst_62 = arith.constant -1.000000e+30 : f32
    %126 = vector.broadcast %cst_62 : f32 to vector<128x128xf32>
    %127 = arith.select %21, %125, %126 : vector<128x128xi1>, vector<128x128xf32>
    %c3 = arith.constant 3 : index
    %c0_63 = arith.constant 0 : index
    %c0_64 = arith.constant 0 : index
    %128 = vector.load %arg8[%c3, %c0_63, %c0_64] : memref<4x1x128xf32, #tpu.memory_space<vmem>>, vector<1x1x128xf32>
    %129 = vector.shape_cast %128 : vector<1x1x128xf32> to vector<1x128xf32>
    %c3_65 = arith.constant 3 : index
    %c0_66 = arith.constant 0 : index
    %c0_67 = arith.constant 0 : index
    %130 = vector.load %arg9[%c3_65, %c0_66, %c0_67] : memref<4x1x128xf32, #tpu.memory_space<vmem>>, vector<1x1x128xf32>
    %131 = vector.shape_cast %130 : vector<1x1x128xf32> to vector<1x128xf32>
    %cst_68 = arith.constant dense<0xFF800000> : vector<128xf32>
    %132 = vector.multi_reduction <maximumf>, %127, %cst_68 [0] : vector<128x128xf32> to vector<128xf32>
    %133 = vector.shape_cast %132 : vector<128xf32> to vector<1x128xf32>
    %134 = arith.maximumf %129, %133 : vector<1x128xf32>
    %135 = arith.subf %129, %134 : vector<1x128xf32>
    %136 = math.exp %135 : vector<1x128xf32>
    %137 = vector.broadcast %134 : vector<1x128xf32> to vector<128x128xf32>
    %138 = arith.subf %127, %137 : vector<128x128xf32>
    %139 = math.exp %138 : vector<128x128xf32>
    %140 = arith.mulf %136, %131 : vector<1x128xf32>
    %cst_69 = arith.constant dense<0.000000e+00> : vector<128xf32>
    %141 = vector.multi_reduction <add>, %139, %cst_69 [0] : vector<128x128xf32> to vector<128xf32>
    %142 = vector.shape_cast %141 : vector<128xf32> to vector<1x128xf32>
    %143 = arith.addf %140, %142 : vector<1x128xf32>
    %c3_70 = arith.constant 3 : index
    %c0_71 = arith.constant 0 : index
    %c0_72 = arith.constant 0 : index
    %144 = vector.load %arg9[%c3_70, %c0_71, %c0_72] : memref<4x1x128xf32, #tpu.memory_space<vmem>>, vector<1x1x128xf32>
    %145 = vector.shape_cast %144 : vector<1x1x128xf32> to vector<1x128xf32>
    %146 = vector.shape_cast %143 : vector<1x128xf32> to vector<1x1x128xf32>
    tpu.vector_store %arg9[%c3_70, %c0_71, %c0_72], %146 {strides = array<i32>} : memref<4x1x128xf32, #tpu.memory_space<vmem>>, vector<1x1x128xf32>,
    %c3_73 = arith.constant 3 : index
    %c0_74 = arith.constant 0 : index
    %c0_75 = arith.constant 0 : index
    %147 = vector.load %arg8[%c3_73, %c0_74, %c0_75] : memref<4x1x128xf32, #tpu.memory_space<vmem>>, vector<1x1x128xf32>
    %148 = vector.shape_cast %147 : vector<1x1x128xf32> to vector<1x128xf32>
    %149 = vector.shape_cast %134 : vector<1x128xf32> to vector<1x1x128xf32>
    tpu.vector_store %arg8[%c3_73, %c0_74, %c0_75], %149 {strides = array<i32>} : memref<4x1x128xf32, #tpu.memory_space<vmem>>, vector<1x1x128xf32>,
    %cst_76 = arith.constant dense<0.000000e+00> : vector<8x128xf32>
    %150 = tpu.matmul %124, %139, %cst_76 {dimension_numbers = #tpu.dot_dimension_numbers<[1], [0], [0], [1], [0, 0, 1, 1], [], []>} : vector<8x128xf32>, vector<128x128xf32>, vector<8x128xf32> -> vector<8x128xf32>
    %151 = vector.extract_strided_slice %22 {offsets = [24, 0], sizes = [8, 128], strides = [1, 1]} : vector<32x128xf32> to vector<8x128xf32>
    %152 = vector.broadcast %136 : vector<1x128xf32> to vector<8x128xf32>
    %153 = arith.mulf %151, %152 : vector<8x128xf32>
    %154 = arith.addf %153, %150 : vector<8x128xf32>
    %155 = tpu.concatenate %55, %88, %121, %154 in 0 : vector<8x128xf32>, vector<8x128xf32>, vector<8x128xf32>, vector<8x128xf32> -> vector<32x128xf32>
    %c0_77 = arith.constant 0 : index
    %c0_78 = arith.constant 0 : index
    %156 = vector.load %arg7[%c0_77, %c0_78] : memref<32x128xf32, #tpu.memory_space<vmem>>, vector<32x128xf32>
    tpu.vector_store %arg7[%c0_77, %c0_78], %155 {strides = array<i32>} : memref<32x128xf32, #tpu.memory_space<vmem>>, vector<32x128xf32>,
    %c0_i32_79 = arith.constant 0 : i32
    %157 = arith.cmpi eq, %arg2, %c0_i32_79 : i32
    %158 = arith.extui %157 : i1 to i32
    %c0_i32_80 = arith.constant 0 : i32
    %159 = arith.cmpi ne, %158, %c0_i32_80 : i32
    scf.if %159 {
      %c0_81 = arith.constant 0 : index
      %c0_82 = arith.constant 0 : index
      %c0_83 = arith.constant 0 : index
      %160 = vector.load %arg9[%c0_81, %c0_82, %c0_83] : memref<4x1x128xf32, #tpu.memory_space<vmem>>, vector<4x1x128xf32>
      %161 = tpu.reciprocal %160 {approx = true} : vector<4x1x128xf32> -> vector<4x1x128xf32>
      %c0_84 = arith.constant 0 : index
      %c0_85 = arith.constant 0 : index
      %162 = vector.load %arg7[%c0_84, %c0_85] : memref<32x128xf32, #tpu.memory_space<vmem>>, vector<8x128xf32>
      %163 = vector.extract_strided_slice %161 {offsets = [0, 0, 0], sizes = [1, 1, 128], strides = [1, 1, 1]} : vector<4x1x128xf32> to vector<1x1x128xf32>
      %164 = vector.shape_cast %163 : vector<1x1x128xf32> to vector<1x128xf32>
      %165 = vector.broadcast %164 : vector<1x128xf32> to vector<8x128xf32>
      %166 = arith.mulf %162, %165 : vector<8x128xf32>
      %c8 = arith.constant 8 : index
      %c0_86 = arith.constant 0 : index
      %167 = vector.load %arg7[%c8, %c0_86] : memref<32x128xf32, #tpu.memory_space<vmem>>, vector<8x128xf32>
      %168 = vector.extract_strided_slice %161 {offsets = [1, 0, 0], sizes = [1, 1, 128], strides = [1, 1, 1]} : vector<4x1x128xf32> to vector<1x1x128xf32>
      %169 = vector.shape_cast %168 : vector<1x1x128xf32> to vector<1x128xf32>
      %170 = vector.broadcast %169 : vector<1x128xf32> to vector<8x128xf32>
      %171 = arith.mulf %167, %170 : vector<8x128xf32>
      %c16 = arith.constant 16 : index
      %c0_87 = arith.constant 0 : index
      %172 = vector.load %arg7[%c16, %c0_87] : memref<32x128xf32, #tpu.memory_space<vmem>>, vector<8x128xf32>
      %173 = vector.extract_strided_slice %161 {offsets = [2, 0, 0], sizes = [1, 1, 128], strides = [1, 1, 1]} : vector<4x1x128xf32> to vector<1x1x128xf32>
      %174 = vector.shape_cast %173 : vector<1x1x128xf32> to vector<1x128xf32>
      %175 = vector.broadcast %174 : vector<1x128xf32> to vector<8x128xf32>
      %176 = arith.mulf %172, %175 : vector<8x128xf32>
      %c24 = arith.constant 24 : index
      %c0_88 = arith.constant 0 : index
      %177 = vector.load %arg7[%c24, %c0_88] : memref<32x128xf32, #tpu.memory_space<vmem>>, vector<8x128xf32>
      %178 = vector.extract_strided_slice %161 {offsets = [3, 0, 0], sizes = [1, 1, 128], strides = [1, 1, 1]} : vector<4x1x128xf32> to vector<1x1x128xf32>
      %179 = vector.shape_cast %178 : vector<1x1x128xf32> to vector<1x128xf32>
      %180 = vector.broadcast %179 : vector<1x128xf32> to vector<8x128xf32>
      %181 = arith.mulf %177, %180 : vector<8x128xf32>
      %182 = tpu.concatenate %166, %171, %176, %181 in 0 : vector<8x128xf32>, vector<8x128xf32>, vector<8x128xf32>, vector<8x128xf32> -> vector<32x128xf32>
      %c0_89 = arith.constant 0 : index
      %c0_90 = arith.constant 0 : index
      %c0_91 = arith.constant 0 : index
      %183 = vector.load %arg6[%c0_89, %c0_90, %c0_91] : memref<1x32x128xf32, #tpu.memory_space<vmem>>, vector<1x32x128xf32>
      %184 = vector.shape_cast %183 : vector<1x32x128xf32> to vector<32x128xf32>
      %185 = vector.shape_cast %182 : vector<32x128xf32> to vector<1x32x128xf32>
      tpu.vector_store %arg6[%c0_89, %c0_90, %c0_91], %185 {strides = array<i32>} : memref<1x32x128xf32, #tpu.memory_space<vmem>>, vector<1x32x128xf32>,
    } else {
    }
    return
  }
  func.func @transform_0(%arg0: i32, %arg1: i32, %arg2: i32) -> (i32, i32, i32) {
    %c0_i32 = arith.constant 0 : i32
    %c0_i32_0 = arith.constant 0 : i32
    return %arg0, %c0_i32, %arg1 : i32, i32, i32
  }
  func.func @transform_1(%arg0: i32, %arg1: i32, %arg2: i32) -> (i32, i32, i32) {
    %c0_i32 = arith.constant 0 : i32
    %c0_i32_0 = arith.constant 0 : i32
    return %arg0, %c0_i32, %arg2 : i32, i32, i32
  }
  func.func @transform_2(%arg0: i32, %arg1: i32, %arg2: i32) -> (i32, i32) {
    %c0_i32 = arith.constant 0 : i32
    %c0_i32_0 = arith.constant 0 : i32
    %c0_i32_1 = arith.constant 0 : i32
    return %c0_i32, %c0_i32_0 : i32, i32
  }
  func.func @transform_3(%arg0: i32, %arg1: i32, %arg2: i32) -> (i32, i32, i32) {
    %c0_i32 = arith.constant 0 : i32
    %c0_i32_0 = arith.constant 0 : i32
    return %arg0, %c0_i32, %arg1 : i32, i32, i32
  }
}

</mosaic_0001>

<llo_original>
// kernel: tpu_custom_call.1
$region0: #{tpu_custom_call.1}
  #allocation0 [shape = 'u32[]', space=smem, size = 0x4, offset = 0x4, fixed_abs, tag = 'smem constant byte address 0x4 - core index']
  #allocation1 [shape = 'u32[144,128]{1,0:T(1,128)}', space=vmem, size = 0x12000, scoped, tag = 'internal scratch']
  #allocation2 [shape = 'f32[32,128]{1,0:T(8,128)}', space=vmem, size = 0x4000, scoped, tag = 'scratch operand']
  #allocation3 [shape = 'f32[4,1,128]{2,1,0:T(1,128)}', space=vmem, size = 0x800, scoped, tag = 'scratch operand']
  #allocation4 [shape = 'f32[4,1,128]{2,1,0:T(1,128)}', space=vmem, size = 0x800, scoped, tag = 'scratch operand']
  %s0 = inlined_call_operand.hbm [shape: f32[2,32,128], index: 0, kind: input, shape index: {}]
  %s1 = inlined_call_operand.hbm [shape: f32[2,32,128], index: 1, kind: input, shape index: {}]
  %s2 = inlined_call_operand.hbm [shape: f32[96,32], index: 2, kind: input, shape index: {}]
  %s3 = inlined_call_operand.hbm [shape: f32[2,32,128], index: 3, kind: output, shape index: {}]
  %s4 = sld [smem:[#allocation0]]
  $region65: #{tpu_custom_call.1} parent=0
    _
  %s6 = ssub.s32 1, %s4
  %s7 = scalar_select 0, %s6, %s4
  $region1: #{tpu_custom_call.1} parent=0
    #allocation5 [shape = 'u8[32768]{0}', space=vmem, size = 0x8000, scoped, tag = 'input window, operand 0']
    #allocation6 [shape = 's32[2]{0}', space=sflag, size = 0x8, scoped, tag = 'scoped memory for tpu_custom_call.1']
    #allocation7 [shape = 's32[2]{0}', space=sflag, size = 0x8, scoped, tag = 'scoped memory for tpu_custom_call.1']
    #allocation8 [shape = 'u8[32768]{0}', space=vmem, size = 0x8000, scoped, tag = 'input window, operand 1']
    #allocation9 [shape = 's32[2]{0}', space=sflag, size = 0x8, scoped, tag = 'scoped memory for tpu_custom_call.1']
    #allocation10 [shape = 'u8[49152]{0}', space=vmem, size = 0xc000, scoped, tag = 'input window, operand 2, single buffered']
    #allocation11 [shape = 'u8[32768]{0}', space=vmem, size = 0x8000, scoped, tag = 'output window, operand 0']
    %8 = vsyncpa [#allocation6], 0
    %s9 = scalar_lea.sflag [#allocation6], 1
    %10 = vsyncpa %s9, 0
    %11 = vsyncpa [#allocation9], 0
    %s12 = scalar_lea.sflag [#allocation9], 1
    %13 = vsyncpa %s12, 0
    %14 = vsyncpa [#allocation7], 0
    %s15 = scalar_lea.sflag [#allocation7], 1
    %16 = vsyncpa %s15, 0
    loop: start=0, step=1, limit=4
    $region2: #{tpu_custom_call.1} parent=1 // loop_pre_header
      _
    $region3: #{tpu_custom_call.1} parent=1 // loop_header
      %s18 = sphi 0, %s22
      %p19 = scmp.ge.s32.totalorder %s18, 4
      %s25 = sphi 0, %s44
      %s26 = sphi 0, %s40
      %s27 = sphi 0, %s36
      %s28 = sphi 0, %s25
      %s29 = sphi 0, %s26
      %s30 = sphi 0, %s27
      %s31 = sphi 0, %s28
      %s32 = sphi 0, %s29
      %s33 = sphi 0, %s30
      %s49 = sphi 0, %s51
      %s52 = sphi 0, %s49
      %s53 = sphi 0, %s52
      %s69 = sphi 0, %s53
      %s77 = sphi 0, %s79
      %s80 = sphi 0, %s77
      %s81 = sphi 0, %s80
      %s97 = sphi 0, %s81
      %s101 = sphi 0, %s101
      %s103 = sphi 0, %s101
      %s104 = sphi 0, %s103
      %s118 = sphi 0, %s104
      %s126 = sphi 0, %s128
      %s129 = sphi 0, %s126
      %s130 = sphi 0, %s129
      %s146 = sphi 0, %s130
    $region4: #{tpu_custom_call.1} parent=1 // loop_header_branch
      %21 = sbr.rel (%p19) target = $region8
    $region5: #{tpu_custom_call.1} parent=1 // loop_body
      %s23 = ssub.s32 %s18, 1
      %s24 = ssub.s32 %s18, 2
      %s34 = sadd.s32 1, %s27
      %p35 = scmp.ge.s32.totalorder %s34, 1
      %s36 = scalar_select %p35, 0, %s34
      %s37 = sadd.s32 1, %s26
      %s38 = scalar_select %p35, %s37, %s26
      %p39 = scmp.ge.s32.totalorder %s38, 1
      %s40 = scalar_select %p39, 0, %s38
      %s41 = sadd.s32 1, %s25
      %s42 = scalar_select %p39, %s41, %s25
      %p43 = scmp.ge.s32.totalorder %s42, 2
      %s44 = scalar_select %p43, 0, %s42
      %s45 = ssub.s32 %s25, %s44
      %s46 = ssub.s32 %s26, %s40
      %s47 = sor.u32 %s45, %s46
      %p48 = scmp.eq.s32.totalorder %s47, 0
      %s50 = sadd.s32 %s49, 1
      %s51 = scalar_select %p48, %s49, %s50
      %p54 = pneg %p48
      %p55 = scmp.eq.s32.totalorder %s18, 1
      %p56 = por %p54, %p55
      %p57 = scmp.ne.s32.totalorder %s49, %s52
      %p58 = scmp.eq.s32.totalorder %s18, 0
      %p59 = por %p57, %p58
      %p60 = scmp.ne.s32.totalorder %s49, %s52
      %p61 = scmp.eq.s32.totalorder %s23, 1
      %p62 = por %p60, %p61
      %p63 = scmp.ne.s32.totalorder %s52, %s53
      %p64 = scmp.eq.s32.totalorder %s23, 0
      %p65 = por %p63, %p64
      %p66 = scmp.ne.s32.totalorder %s52, %s53
      %p67 = scmp.eq.s32.totalorder %s24, 1
      %p68 = por %p66, %p67
      %p70 = scmp.ne.s32.totalorder %s53, %s69
      %p71 = scmp.eq.s32.totalorder %s24, 0
      %p72 = por %p70, %p71
      %s73 = ssub.s32 %s25, %s44
      %s74 = ssub.s32 %s27, %s36
      %s75 = sor.u32 %s73, %s74
      %p76 = scmp.eq.s32.totalorder %s75, 0
      %s78 = sadd.s32 %s77, 1
      %s79 = scalar_select %p76, %s77, %s78
      %p82 = pneg %p76
      %p83 = scmp.eq.s32.totalorder %s18, 1
      %p84 = por %p82, %p83
      %p85 = scmp.ne.s32.totalorder %s77, %s80
      %p86 = scmp.eq.s32.totalorder %s18, 0
      %p87 = por %p85, %p86
      %p88 = scmp.ne.s32.totalorder %s77, %s80
      %p89 = scmp.eq.s32.totalorder %s23, 1
      %p90 = por %p88, %p89
      %p91 = scmp.ne.s32.totalorder %s80, %s81
      %p92 = scmp.eq.s32.totalorder %s23, 0
      %p93 = por %p91, %p92
      %p94 = scmp.ne.s32.totalorder %s80, %s81
      %p95 = scmp.eq.s32.totalorder %s24, 1
      %p96 = por %p94, %p95
      %p98 = scmp.ne.s32.totalorder %s81, %s97
      %p99 = scmp.eq.s32.totalorder %s24, 0
      %p100 = por %p98, %p99
      %s102 = sadd.s32 %s101, 1
      %p105 = scmp.eq.s32.totalorder %s18, 1
      %p106 = scmp.ne.s32.totalorder %s101, %s103
      %p107 = scmp.eq.s32.totalorder %s18, 0
      %p108 = por %p106, %p107
      %p109 = scmp.ne.s32.totalorder %s101, %s103
      %p110 = scmp.eq.s32.totalorder %s23, 1
      %p111 = por %p109, %p110
      %p112 = scmp.ne.s32.totalorder %s103, %s104
      %p113 = scmp.eq.s32.totalorder %s23, 0
      %p114 = por %p112, %p113
      %p115 = scmp.ne.s32.totalorder %s103, %s104
      %p116 = scmp.eq.s32.totalorder %s24, 1
      %p117 = por %p115, %p116
      %p119 = scmp.ne.s32.totalorder %s104, %s118
      %p120 = scmp.eq.s32.totalorder %s24, 0
      %p121 = por %p119, %p120
      %s122 = ssub.s32 %s25, %s44
      %s123 = ssub.s32 %s26, %s40
      %s124 = sor.u32 %s122, %s123
      %p125 = scmp.eq.s32.totalorder %s124, 0
      %s127 = sadd.s32 %s126, 1
      %s128 = scalar_select %p125, %s126, %s127
      %p131 = pneg %p125
      %p132 = scmp.eq.s32.totalorder %s18, 1
      %p133 = por %p131, %p132
      %p134 = scmp.ne.s32.totalorder %s126, %s129
      %p135 = scmp.eq.s32.totalorder %s18, 0
      %p136 = por %p134, %p135
      %p137 = scmp.ne.s32.totalorder %s126, %s129
      %p138 = scmp.eq.s32.totalorder %s23, 1
      %p139 = por %p137, %p138
      %p140 = scmp.ne.s32.totalorder %s129, %s130
      %p141 = scmp.eq.s32.totalorder %s23, 0
      %p142 = por %p140, %p141
      %p143 = scmp.ne.s32.totalorder %s129, %s130
      %p144 = scmp.eq.s32.totalorder %s24, 1
      %p145 = por %p143, %p144
      %p147 = scmp.ne.s32.totalorder %s130, %s146
      %p148 = scmp.eq.s32.totalorder %s24, 0
      %p149 = por %p147, %p148
      %p150 = scmp.le.s32.totalorder 1, %s18
      %p151 = scmp.lt.s32.totalorder %s18, 3
      %p152 = pnand %p150, %p151
      %p153 = pneg %p152
      // Predicated region
      $region9: #{tpu_custom_call.1} parent=5 // pred_check
        _
      $region10: #{tpu_custom_call.1} parent=5 // pred_check_branch
        %155 = sbr.rel (%p152) target = $region12
      $region11: #{tpu_custom_call.1} parent=5 // pred_region
        %s156 = ssub.s32 %s18, 1
        // Predicated region
        $region13: #{tpu_custom_call.1} parent=11 // pred_check
          %p157 = pneg %p114
        $region14: #{tpu_custom_call.1} parent=11 // pred_check_branch
          %159 = sbr.rel (%p157) target = $region16
        $region15: #{tpu_custom_call.1} parent=11 // pred_region
          %s161 = ssub.s32 1536, 1536
          %162 = vsyncadd [#allocation9], %s161
          %s163 = sshll.u32 [#allocation10], 4
          %s164 = int_to_ptr.vmem [resolvable:$true] %s163
          %169 = dma.hbm_to_vmem [thread:$0]  %s2, 1536, %s164, [#allocation9], 128, 128, 8
        $region16: #{tpu_custom_call.1} parent=11 // pred_fallthru
          _
      $region12: #{tpu_custom_call.1} parent=5 // pred_fallthru
        _
      %p170 = scmp.lt.s32.totalorder %s18, 2
      // Predicated region
      $region17: #{tpu_custom_call.1} parent=5 // pred_check
        %p171 = pneg %p170
      $region18: #{tpu_custom_call.1} parent=5 // pred_check_branch
        %173 = sbr.rel (%p171) target = $region20
      $region19: #{tpu_custom_call.1} parent=5 // pred_region
        // Predicated region
        $region21: #{tpu_custom_call.1} parent=19 // pred_check
          %p174 = pneg %p59
        $region22: #{tpu_custom_call.1} parent=19 // pred_check_branch
          %176 = sbr.rel (%p174) target = $region24
        $region23: #{tpu_custom_call.1} parent=19 // pred_region
          %s177 = sand.u32 %s49, 1
          %s178 = scalar_lea.sflag [#allocation6], %s177
          %s179 = sand.u32 %s49, 1
          %s180 = smul.addr %s179, 32
          %s181 = scalar_lea.vmem [#allocation5], %s180
          %s183 = ssub.s32 512, 512
          %184 = vsyncadd %s178, %s183
          %s185 = smul.addr %s25, 4
          %s186 = sadd.s32 %s26, %s185
          %s187 = smul.addr %s186, 128
          %s188 = scalar_lea.hbm %s0, %s187
          %s189 = sshll.u32 %s181, 4
          %s190 = int_to_ptr.vmem [resolvable:$true] %s189
          %195 = dma.hbm_to_vmem [thread:$0]  %s188, 512, %s190, %s178, 128, 128, 8
        $region24: #{tpu_custom_call.1} parent=19 // pred_fallthru
          _
        // Predicated region
        $region25: #{tpu_custom_call.1} parent=19 // pred_check
          %p196 = pneg %p87
        $region26: #{tpu_custom_call.1} parent=19 // pred_check_branch
          %198 = sbr.rel (%p196) target = $region28
        $region27: #{tpu_custom_call.1} parent=19 // pred_region
          %s199 = sand.u32 %s18, 1
          %s200 = scalar_lea.sflag [#allocation9], %s199
          %s201 = sand.u32 %s77, 1
          %s202 = smul.addr %s201, 32
          %s203 = scalar_lea.vmem [#allocation8], %s202
          %s205 = ssub.s32 512, 512
          %206 = vsyncadd %s200, %s205
          %s207 = smul.addr %s25, 4
          %s208 = sadd.s32 %s27, %s207
          %s209 = smul.addr %s208, 128
          %s210 = scalar_lea.hbm %s1, %s209
          %s211 = sshll.u32 %s203, 4
          %s212 = int_to_ptr.vmem [resolvable:$true] %s211
          %217 = dma.hbm_to_vmem [thread:$0]  %s210, 512, %s212, %s200, 128, 128, 8
        $region28: #{tpu_custom_call.1} parent=19 // pred_fallthru
          _
      $region20: #{tpu_custom_call.1} parent=5 // pred_fallthru
        _
      %p218 = scmp.le.s32.totalorder 1, %s18
      %p219 = scmp.lt.s32.totalorder %s18, 3
      %p220 = pnand %p218, %p219
      %p221 = pneg %p220
      // Predicated region
      $region29: #{tpu_custom_call.1} parent=5 // pred_check
        _
      $region30: #{tpu_custom_call.1} parent=5 // pred_check_branch
        %223 = sbr.rel (%p220) target = $region32
      $region31: #{tpu_custom_call.1} parent=5 // pred_region
        %s224 = ssub.s32 %s18, 1
        %s225 = sand.u32 %s52, 1
        %s226 = scalar_lea.sflag [#allocation6], %s225
        %s227 = sand.u32 %s52, 1
        %s228 = smul.addr %s227, 32
        %s229 = scalar_lea.vmem [#allocation5], %s228
        // Predicated region
        $region33: #{tpu_custom_call.1} parent=31 // pred_check
          %p230 = pneg %p65
        $region34: #{tpu_custom_call.1} parent=31 // pred_check_branch
          %232 = sbr.rel (%p230) target = $region36
        $region35: #{tpu_custom_call.1} parent=31 // pred_region
          %233 = dma.done %s226, 512
        $region36: #{tpu_custom_call.1} parent=31 // pred_fallthru
          _
        %s234 = sand.u32 %s23, 1
        %s235 = scalar_lea.sflag [#allocation9], %s234
        %s236 = sand.u32 %s80, 1
        %s237 = smul.addr %s236, 32
        %s238 = scalar_lea.vmem [#allocation8], %s237
        // Predicated region
        $region37: #{tpu_custom_call.1} parent=31 // pred_check
          %p239 = pneg %p93
        $region38: #{tpu_custom_call.1} parent=31 // pred_check_branch
          %241 = sbr.rel (%p239) target = $region40
        $region39: #{tpu_custom_call.1} parent=31 // pred_region
          %242 = dma.done %s235, 512
        $region40: #{tpu_custom_call.1} parent=31 // pred_fallthru
          _
        // Predicated region
        $region41: #{tpu_custom_call.1} parent=31 // pred_check
          %p243 = pneg %p114
        $region42: #{tpu_custom_call.1} parent=31 // pred_check_branch
          %245 = sbr.rel (%p243) target = $region44
        $region43: #{tpu_custom_call.1} parent=31 // pred_region
          %246 = dma.done [#allocation9], 1536
        $region44: #{tpu_custom_call.1} parent=31 // pred_fallthru
          _
        %s247 = sand.u32 %s52, 1
        %s248 = scalar_lea.sflag [#allocation6], %s247
        %s249 = sand.u32 %s52, 1
        %s250 = smul.addr %s249, 32
        %s251 = scalar_lea.vmem [#allocation5], %s250
        %p252 = pneg %p65
        %p253 = pneg %p62
        %s254 = sand.u32 %s23, 1
        %s255 = scalar_lea.sflag [#allocation9], %s254
        %s256 = sand.u32 %s80, 1
        %s257 = smul.addr %s256, 32
        %s258 = scalar_lea.vmem [#allocation8], %s257
        %p259 = pneg %p93
        %p260 = pneg %p90
        %p261 = pneg %p114
        %p262 = pneg %p111
        %p263 = pneg %p142
        %p264 = pneg %p139
        %s265 = sand.u32 %s129, 1
        %s266 = scalar_lea.sflag [#allocation7], %s265
        %s267 = sand.u32 %s129, 1
        %s268 = smul.addr %s267, 32
        %s269 = scalar_lea.vmem [#allocation11], %s268
        %p270 = scmp.eq.s32.totalorder %s30, 0
        // Predicated region
        $region45: #{tpu_custom_call.1} parent=31 // pred_check
          %p271 = pneg %p270
        $region46: #{tpu_custom_call.1} parent=31 // pred_check_branch
          %273 = sbr.rel (%p271) target = $region48
        $region47: #{tpu_custom_call.1} parent=31 // pred_region
          %274 = vst [vmem:[#allocation3] sm:$0x1] -inf
          %275 = vst [vmem:[#allocation3 + $0x1] sm:$0x1] -inf
          %276 = vst [vmem:[#allocation3 + $0x2] sm:$0x1] -inf
          %277 = vst [vmem:[#allocation3 + $0x3] sm:$0x1] -inf
          %278 = vst [vmem:[#allocation4] sm:$0x1] 0.0
          %279 = vst [vmem:[#allocation4 + $0x1] sm:$0x1] 0.0
          %280 = vst [vmem:[#allocation4 + $0x2] sm:$0x1] 0.0
          %281 = vst [vmem:[#allocation4 + $0x3] sm:$0x1] 0.0
          %282 = vst [vmem:[#allocation2] sm:$0xff] 0.0
          %283 = vst [vmem:[#allocation2 + $0x8] sm:$0xff] 0.0
          %284 = vst [vmem:[#allocation2 + $0x10] sm:$0xff] 0.0
          %285 = vst [vmem:[#allocation2 + $0x18] sm:$0xff] 0.0
        $region48: #{tpu_custom_call.1} parent=31 // pred_fallthru
          _
        %v286 = vld [vmem:[%s229] sm:$0xff]
        %v287 = vld [vmem:[%s229 + $0x8] sm:$0xff]
        %v288 = vld [vmem:[%s229 + $0x10] sm:$0xff]
        %v289 = vld [vmem:[%s229 + $0x18] sm:$0xff]
        %v290 = vld [vmem:[%s238] sm:$0xff]
        %v291 = vld [vmem:[%s238 + $0x8] sm:$0xff]
        %v292 = vld [vmem:[%s238 + $0x10] sm:$0xff]
        %v293 = vld [vmem:[%s238 + $0x18] sm:$0xff]
        %v294 = vld [vmem:[#allocation10] sm:$0xff]
        %v295 = vld [vmem:[#allocation10 + $0x8] sm:$0xff]
        %v296 = vld [vmem:[#allocation10 + $0x10] sm:$0xff]
        %v297 = vld [vmem:[#allocation10 + $0x18] sm:$0xff]
        %v298 = vld [vmem:[#allocation10 + $0x20] sm:$0xff]
        %v299 = vld [vmem:[#allocation10 + $0x28] sm:$0xff]
        %v300 = vld [vmem:[#allocation10 + $0x30] sm:$0xff]
        %v301 = vld [vmem:[#allocation10 + $0x38] sm:$0xff]
        %v302 = vld [vmem:[#allocation10 + $0x40] sm:$0xff]
        %v303 = vld [vmem:[#allocation10 + $0x48] sm:$0xff]
        %v304 = vld [vmem:[#allocation10 + $0x50] sm:$0xff]
        %v305 = vld [vmem:[#allocation10 + $0x58] sm:$0xff]
        %vm306 = vcmask 261120
        %v308 = vsel %vm306, %v294, 0
        %v311 = vsel %vm306, %v295, 0
        %v314 = vsel %vm306, %v296, 0
        %v317 = vsel %vm306, %v297, 0
        %319 = vmatprep.subr.mxu0 0.0
        %320 = vmatpush1.msra.mxu0 %v286
        %321 = vmatprep.subr.mxu0 0.0
        %322 = vmatpush1.msra.mxu0 %v287
        %323 = vmatprep.subr.mxu0 0.0
        %324 = vmatpush1.msra.mxu0 %v288
        %325 = vmatprep.subr.mxu0 0.0
        %326 = vmatpush1.msra.mxu0 %v289
        %327 = vmatprep.subr.mxu0 0.0
        %328 = vmatpush1.msra.mxu0 0.0
        %329 = vmatprep.subr.mxu0 0.0
        %330 = vmatpush1.msra.mxu0 0.0
        %331 = vmatprep.subr.mxu0 0.0
        %332 = vmatpush1.msra.mxu0 0.0
        %333 = vmatprep.subr.mxu0 0.0
        %334 = vmatpush1.msra.mxu0 0.0
        %335 = vmatprep.subr.mxu0 0.0
        %336 = vmatpush1.msra.mxu0 0.0
        %337 = vmatprep.subr.mxu0 0.0
        %338 = vmatpush1.msra.mxu0 0.0
        %339 = vmatprep.subr.mxu0 0.0
        %340 = vmatpush1.msra.mxu0 0.0
        %341 = vmatprep.subr.mxu0 0.0
        %342 = vmatpush1.msra.mxu0 0.0
        %343 = vmatprep.subr.mxu0 0.0
        %344 = vmatpush1.msra.mxu0 0.0
        %345 = vmatprep.subr.mxu0 0.0
        %346 = vmatpush1.msra.mxu0 0.0
        %347 = vmatprep.subr.mxu0 0.0
        %348 = vmatpush1.msra.mxu0 0.0
        %349 = vmatprep.subr.mxu0 0.0
        %350 = vmatpush1.msra.mxu0 0.0
        %351 = vmatprep.subr.mxu0 0.0
        %352 = vmatpush1.msra.mxu0 0.0
        %353 = vmatprep.subr.mxu0 0.0
        %354 = vmatpush1.msra.mxu0 0.0
        %355 = vmatprep.subr.mxu0 0.0
        %356 = vmatpush1.msra.mxu0 0.0
        %357 = vmatprep.subr.mxu0 0.0
        %358 = vmatpush1.msra.mxu0 0.0
        %359 = vmatprep.subr.mxu0 0.0
        %360 = vmatpush1.msra.mxu0 0.0
        %361 = vmatprep.subr.mxu0 0.0
        %362 = vmatpush1.msra.mxu0 0.0
        %363 = vmatprep.subr.mxu0 0.0
        %364 = vmatpush1.msra.mxu0 0.0
        %365 = vmatprep.subr.mxu0 0.0
        %366 = vmatpush1.msra.mxu0 0.0
        %367 = vmatprep.subr.mxu0 0.0
        %368 = vmatpush1.msra.mxu0 0.0
        %369 = vmatprep.subr.mxu0 0.0
        %370 = vmatpush1.msra.mxu0 0.0
        %371 = vmatprep.subr.mxu0 0.0
        %372 = vmatpush1.msra.mxu0 0.0
        %373 = vmatprep.subr.mxu0 0.0
        %374 = vmatpush1.msra.mxu0 0.0
        %375 = vmatprep.subr.mxu0 0.0
        %376 = vmatpush1.msra.mxu0 0.0
        %377 = vmatprep.subr.mxu0 0.0
        %378 = vmatpush1.msra.mxu0 0.0
        %379 = vmatprep.subr.mxu0 0.0
        %380 = vmatpush1.msra.mxu0 0.0
        %381 = vmatprep.subr.mxu0 0.0
        %382 = vmatpush1.msra.mxu0 0.0
        %383 = vmatprep.mubr.f32.mxu0 0.0
        %384 = vmatmul.mubr.f32.gmra.mrb[0].mxu0 %v308
        %v385 = vpop.f32.mrb[0].mxu0
        %v386 = vadd.f32 0.0, %v385
        %v387 = vpop.f32.mrb[0].mxu0
        %388 = vmatprep.mubr.f32.mxu0 0.0
        %389 = vmatmul.mubr.f32.gmra.mrb[0].mxu0 %v311
        %v390 = vpop.f32.mrb[0].mxu0
        %v391 = vadd.f32 0.0, %v390
        %v392 = vpop.f32.mrb[0].mxu0
        %393 = vmatprep.mubr.f32.mxu0 0.0
        %394 = vmatmul.mubr.f32.gmra.mrb[0].mxu0 %v314
        %v395 = vpop.f32.mrb[0].mxu0
        %v396 = vadd.f32 0.0, %v395
        %v397 = vpop.f32.mrb[0].mxu0
        %398 = vmatprep.mubr.f32.mxu0 0.0
        %399 = vmatmul.mubr.f32.gmra.mrb[0].mxu0 %v317
        %v400 = vpop.f32.mrb[0].mxu0
        %v401 = vadd.f32 0.0, %v400
        %v402 = vpop.f32.mrb[0].mxu0
        %403 = vdwg.mxu0
        %v404 = vmul.f32 %v386, 0.35355338
        %v405 = vmul.f32 %v391, 0.35355338
        %v406 = vmul.f32 %v396, 0.35355338
        %v407 = vmul.f32 %v401, 0.35355338
        %v409 = vsel %vm306, %v298, 0
        %v412 = vsel %vm306, %v299, 0
        %v415 = vsel %vm306, %v300, 0
        %v418 = vsel %vm306, %v301, 0
        %v421 = vsel %vm306, %v302, 0
        %v424 = vsel %vm306, %v303, 0
        %v427 = vsel %vm306, %v304, 0
        %v430 = vsel %vm306, %v305, 0
        %432 = vmatprep.subr.mxu0 0.0
        %433 = vmatpush1.msra.mxu0 %v290
        %434 = vmatprep.subr.mxu0 0.0
        %435 = vmatpush1.msra.mxu0 %v291
        %436 = vmatprep.subr.mxu0 0.0
        %437 = vmatpush1.msra.mxu0 %v292
        %438 = vmatprep.subr.mxu0 0.0
        %439 = vmatpush1.msra.mxu0 %v293
        %440 = vmatprep.subr.mxu0 0.0
        %441 = vmatpush1.msra.mxu0 0.0
        %442 = vmatprep.subr.mxu0 0.0
        %443 = vmatpush1.msra.mxu0 0.0
        %444 = vmatprep.subr.mxu0 0.0
        %445 = vmatpush1.msra.mxu0 0.0
        %446 = vmatprep.subr.mxu0 0.0
        %447 = vmatpush1.msra.mxu0 0.0
        %448 = vmatprep.subr.mxu0 0.0
        %449 = vmatpush1.msra.mxu0 0.0
        %450 = vmatprep.subr.mxu0 0.0
        %451 = vmatpush1.msra.mxu0 0.0
        %452 = vmatprep.subr.mxu0 0.0
        %453 = vmatpush1.msra.mxu0 0.0
        %454 = vmatprep.subr.mxu0 0.0
        %455 = vmatpush1.msra.mxu0 0.0
        %456 = vmatprep.subr.mxu0 0.0
        %457 = vmatpush1.msra.mxu0 0.0
        %458 = vmatprep.subr.mxu0 0.0
        %459 = vmatpush1.msra.mxu0 0.0
        %460 = vmatprep.subr.mxu0 0.0
        %461 = vmatpush1.msra.mxu0 0.0
        %462 = vmatprep.subr.mxu0 0.0
        %463 = vmatpush1.msra.mxu0 0.0
        %464 = vmatprep.subr.mxu0 0.0
        %465 = vmatpush1.msra.mxu0 0.0
        %466 = vmatprep.subr.mxu0 0.0
        %467 = vmatpush1.msra.mxu0 0.0
        %468 = vmatprep.subr.mxu0 0.0
        %469 = vmatpush1.msra.mxu0 0.0
        %470 = vmatprep.subr.mxu0 0.0
        %471 = vmatpush1.msra.mxu0 0.0
        %472 = vmatprep.subr.mxu0 0.0
        %473 = vmatpush1.msra.mxu0 0.0
        %474 = vmatprep.subr.mxu0 0.0
        %475 = vmatpush1.msra.mxu0 0.0
        %476 = vmatprep.subr.mxu0 0.0
        %477 = vmatpush1.msra.mxu0 0.0
        %478 = vmatprep.subr.mxu0 0.0
        %479 = vmatpush1.msra.mxu0 0.0
        %480 = vmatprep.subr.mxu0 0.0
        %481 = vmatpush1.msra.mxu0 0.0
        %482 = vmatprep.subr.mxu0 0.0
        %483 = vmatpush1.msra.mxu0 0.0
        %484 = vmatprep.subr.mxu0 0.0
        %485 = vmatpush1.msra.mxu0 0.0
        %486 = vmatprep.subr.mxu0 0.0
        %487 = vmatpush1.msra.mxu0 0.0
        %488 = vmatprep.subr.mxu0 0.0
        %489 = vmatpush1.msra.mxu0 0.0
        %490 = vmatprep.subr.mxu0 0.0
        %491 = vmatpush1.msra.mxu0 0.0
        %492 = vmatprep.subr.mxu0 0.0
        %493 = vmatpush1.msra.mxu0 0.0
        %494 = vmatprep.subr.mxu0 0.0
        %495 = vmatpush1.msra.mxu0 0.0
        %496 = vmatprep.mubr.f32.mxu0 0.0
        %497 = vmatmul.mubr.f32.gmra.mrb[0].mxu0 %v409
        %v498 = vpop.f32.mrb[0].mxu0
        %v499 = vadd.f32 0.0, %v498
        %v500 = vpop.f32.mrb[0].mxu0
        %501 = vmatprep.mubr.f32.mxu0 0.0
        %502 = vmatmul.mubr.f32.gmra.mrb[0].mxu0 %v412
        %v503 = vpop.f32.mrb[0].mxu0
        %v504 = vadd.f32 0.0, %v503
        %v505 = vpop.f32.mrb[0].mxu0
        %506 = vmatprep.mubr.f32.mxu0 0.0
        %507 = vmatmul.mubr.f32.gmra.mrb[0].mxu0 %v415
        %v508 = vpop.f32.mrb[0].mxu0
        %v509 = vadd.f32 0.0, %v508
        %v510 = vpop.f32.mrb[0].mxu0
        %511 = vmatprep.mubr.f32.mxu0 0.0
        %512 = vmatmul.mubr.f32.gmra.mrb[0].mxu0 %v418
        %v513 = vpop.f32.mrb[0].mxu0
        %v514 = vadd.f32 0.0, %v513
        %v515 = vpop.f32.mrb[0].mxu0
        %516 = vmatprep.mubr.f32.mxu0 0.0
        %517 = vmatmul.mubr.f32.gmra.mrb[0].mxu0 %v421
        %v518 = vpop.f32.mrb[0].mxu0
        %v519 = vadd.f32 0.0, %v518
        %v520 = vpop.f32.mrb[0].mxu0
        %521 = vmatprep.mubr.f32.mxu0 0.0
        %522 = vmatmul.mubr.f32.gmra.mrb[0].mxu0 %v424
        %v523 = vpop.f32.mrb[0].mxu0
        %v524 = vadd.f32 0.0, %v523
        %v525 = vpop.f32.mrb[0].mxu0
        %526 = vmatprep.mubr.f32.mxu0 0.0
        %527 = vmatmul.mubr.f32.gmra.mrb[0].mxu0 %v427
        %v528 = vpop.f32.mrb[0].mxu0
        %v529 = vadd.f32 0.0, %v528
        %v530 = vpop.f32.mrb[0].mxu0
        %531 = vmatprep.mubr.f32.mxu0 0.0
        %532 = vmatmul.mubr.f32.gmra.mrb[0].mxu0 %v430
        %v533 = vpop.f32.mrb[0].mxu0
        %v534 = vadd.f32 0.0, %v533
        %v535 = vpop.f32.mrb[0].mxu0
        %536 = vdwg.mxu0
        %v537 = vlaneseq
        %v538 = vshrl.u32 %v537, 7
        %v539 = vadd.s32 %v538, 8
        %v540 = vadd.s32 %v538, 16
        %v541 = vadd.s32 %v538, 24
        %v542 = vadd.s32 %v538, 32
        %v543 = vadd.s32 %v538, 40
        %v544 = vadd.s32 %v538, 48
        %v545 = vadd.s32 %v538, 56
        %v546 = vadd.s32 %v538, 64
        %v547 = vadd.s32 %v538, 72
        %v548 = vadd.s32 %v538, 80
        %v549 = vadd.s32 %v538, 88
        %v550 = vadd.s32 %v538, 96
        %v551 = vadd.s32 %v538, 104
        %v552 = vadd.s32 %v538, 112
        %v553 = vadd.s32 %v538, 120
        %s554 = smul.u32 %s30, 128
        %v555 = vstv %s554
        %v556 = vadd.s32 %v538, %v555
        %v557 = vadd.s32 %v539, %v555
        %v558 = vadd.s32 %v540, %v555
        %v559 = vadd.s32 %v541, %v555
        %v560 = vadd.s32 %v542, %v555
        %v561 = vadd.s32 %v543, %v555
        %v562 = vadd.s32 %v544, %v555
        %v563 = vadd.s32 %v545, %v555
        %v564 = vadd.s32 %v546, %v555
        %v565 = vadd.s32 %v547, %v555
        %v566 = vadd.s32 %v548, %v555
        %v567 = vadd.s32 %v549, %v555
        %v568 = vadd.s32 %v550, %v555
        %v569 = vadd.s32 %v551, %v555
        %v570 = vadd.s32 %v552, %v555
        %v571 = vadd.s32 %v553, %v555
        %vm572 = vcmp.lt.s32.totalorder %v556, 8
        %vm573 = vcmp.lt.s32.totalorder %v557, 8
        %vm574 = vcmp.lt.s32.totalorder %v558, 8
        %vm575 = vcmp.lt.s32.totalorder %v559, 8
        %vm576 = vcmp.lt.s32.totalorder %v560, 8
        %vm577 = vcmp.lt.s32.totalorder %v561, 8
        %vm578 = vcmp.lt.s32.totalorder %v562, 8
        %vm579 = vcmp.lt.s32.totalorder %v563, 8
        %vm580 = vcmp.lt.s32.totalorder %v564, 8
        %vm581 = vcmp.lt.s32.totalorder %v565, 8
        %vm582 = vcmp.lt.s32.totalorder %v566, 8
        %vm583 = vcmp.lt.s32.totalorder %v567, 8
        %vm584 = vcmp.lt.s32.totalorder %v568, 8
        %vm585 = vcmp.lt.s32.totalorder %v569, 8
        %vm586 = vcmp.lt.s32.totalorder %v570, 8
        %vm587 = vcmp.lt.s32.totalorder %v571, 8
        %v588 = vld [vmem:[#allocation2] sm:$0xff]
        %v589 = vld [vmem:[#allocation2 + $0x8] sm:$0xff]
        %v590 = vld [vmem:[#allocation2 + $0x10] sm:$0xff]
        %v591 = vld [vmem:[#allocation2 + $0x18] sm:$0xff]
        %592 = vxpose.xlu0.b32.start [1/16] %v499, 128
        %593 = vxpose.xlu0.b32.cont [2/16] 0.0, 128
        %594 = vxpose.xlu0.b32.cont [3/16] 0.0, 128
        %595 = vxpose.xlu0.b32.cont [4/16] 0.0, 128
        %596 = vxpose.xlu0.b32.cont [5/16] 0.0, 128
        %597 = vxpose.xlu0.b32.cont [6/16] 0.0, 128
        %598 = vxpose.xlu0.b32.cont [7/16] 0.0, 128
        %599 = vxpose.xlu0.b32.cont [8/16] 0.0, 128
        %600 = vxpose.xlu0.b32.cont [9/16] 0.0, 128
        %601 = vxpose.xlu0.b32.cont [10/16] 0.0, 128
        %602 = vxpose.xlu0.b32.cont [11/16] 0.0, 128
        %603 = vxpose.xlu0.b32.cont [12/16] 0.0, 128
        %604 = vxpose.xlu0.b32.cont [13/16] 0.0, 128
        %605 = vxpose.xlu0.b32.cont [14/16] 0.0, 128
        %606 = vxpose.xlu0.b32.cont [15/16] 0.0, 128
        %607 = vxpose.xlu0.b32.end [16/16] 0.0, 128
        %v608 = vpop.trf.xlu0
        %v609 = vpop.trf.xlu0
        %v610 = vpop.trf.xlu0
        %v611 = vpop.trf.xlu0
        %v612 = vpop.trf.xlu0
        %v613 = vpop.trf.xlu0
        %v614 = vpop.trf.xlu0
        %v615 = vpop.trf.xlu0
        %v616 = vpop.trf.xlu0
        %v617 = vpop.trf.xlu0
        %v618 = vpop.trf.xlu0
        %v619 = vpop.trf.xlu0
        %v620 = vpop.trf.xlu0
        %v621 = vpop.trf.xlu0
        %v622 = vpop.trf.xlu0
        %v623 = vpop.trf.xlu0
        %vm624 = vcmask 64512
        %v626 = vsel %vm624, %v608, 0
        %v629 = vsel %vm624, %v609, 0
        %v632 = vsel %vm624, %v610, 0
        %v635 = vsel %vm624, %v611, 0
        %v638 = vsel %vm624, %v612, 0
        %v641 = vsel %vm624, %v613, 0
        %v644 = vsel %vm624, %v614, 0
        %v647 = vsel %vm624, %v615, 0
        %v650 = vsel %vm624, %v616, 0
        %v653 = vsel %vm624, %v617, 0
        %v656 = vsel %vm624, %v618, 0
        %v659 = vsel %vm624, %v619, 0
        %v662 = vsel %vm624, %v620, 0
        %v665 = vsel %vm624, %v621, 0
        %v668 = vsel %vm624, %v622, 0
        %v671 = vsel %vm624, %v623, 0
        %673 = vmatprep.subr.mxu0 0.0
        %674 = vmatpush1.msra.mxu0 %v404
        %675 = vmatprep.subr.mxu0 0.0
        %676 = vmatpush1.msra.mxu0 0.0
        %677 = vmatprep.subr.mxu0 0.0
        %678 = vmatpush1.msra.mxu0 0.0
        %679 = vmatprep.subr.mxu0 0.0
        %680 = vmatpush1.msra.mxu0 0.0
        %681 = vmatprep.subr.mxu0 0.0
        %682 = vmatpush1.msra.mxu0 0.0
        %683 = vmatprep.subr.mxu0 0.0
        %684 = vmatpush1.msra.mxu0 0.0
        %685 = vmatprep.subr.mxu0 0.0
        %686 = vmatpush1.msra.mxu0 0.0
        %687 = vmatprep.subr.mxu0 0.0
        %688 = vmatpush1.msra.mxu0 0.0
        %689 = vmatprep.subr.mxu0 0.0
        %690 = vmatpush1.msra.mxu0 0.0
        %691 = vmatprep.subr.mxu0 0.0
        %692 = vmatpush1.msra.mxu0 0.0
        %693 = vmatprep.subr.mxu0 0.0
        %694 = vmatpush1.msra.mxu0 0.0
        %695 = vmatprep.subr.mxu0 0.0
        %696 = vmatpush1.msra.mxu0 0.0
        %697 = vmatprep.subr.mxu0 0.0
        %698 = vmatpush1.msra.mxu0 0.0
        %699 = vmatprep.subr.mxu0 0.0
        %700 = vmatpush1.msra.mxu0 0.0
        %701 = vmatprep.subr.mxu0 0.0
        %702 = vmatpush1.msra.mxu0 0.0
        %703 = vmatprep.subr.mxu0 0.0
        %704 = vmatpush1.msra.mxu0 0.0
        %705 = vmatprep.subr.mxu0 0.0
        %706 = vmatpush1.msra.mxu0 0.0
        %707 = vmatprep.subr.mxu0 0.0
        %708 = vmatpush1.msra.mxu0 0.0
        %709 = vmatprep.subr.mxu0 0.0
        %710 = vmatpush1.msra.mxu0 0.0
        %711 = vmatprep.subr.mxu0 0.0
        %712 = vmatpush1.msra.mxu0 0.0
        %713 = vmatprep.subr.mxu0 0.0
        %714 = vmatpush1.msra.mxu0 0.0
        %715 = vmatprep.subr.mxu0 0.0
        %716 = vmatpush1.msra.mxu0 0.0
        %717 = vmatprep.subr.mxu0 0.0
        %718 = vmatpush1.msra.mxu0 0.0
        %719 = vmatprep.subr.mxu0 0.0
        %720 = vmatpush1.msra.mxu0 0.0
        %721 = vmatprep.subr.mxu0 0.0
        %722 = vmatpush1.msra.mxu0 0.0
        %723 = vmatprep.subr.mxu0 0.0
        %724 = vmatpush1.msra.mxu0 0.0
        %725 = vmatprep.subr.mxu0 0.0
        %726 = vmatpush1.msra.mxu0 0.0
        %727 = vmatprep.subr.mxu0 0.0
        %728 = vmatpush1.msra.mxu0 0.0
        %729 = vmatprep.subr.mxu0 0.0
        %730 = vmatpush1.msra.mxu0 0.0
        %731 = vmatprep.subr.mxu0 0.0
        %732 = vmatpush1.msra.mxu0 0.0
        %733 = vmatprep.subr.mxu0 0.0
        %734 = vmatpush1.msra.mxu0 0.0
        %735 = vmatprep.subr.mxu0 0.0
        %736 = vmatpush1.msra.mxu0 0.0
        %737 = vmatprep.mubr.f32.mxu0 0.0
        %738 = vmatmul.mubr.f32.gmra.mrb[0].mxu0 %v626
        %v739 = vpop.f32.mrb[0].mxu0
        %v740 = vadd.f32 0.0, %v739
        %v741 = vpop.f32.mrb[0].mxu0
        %742 = vmatprep.mubr.f32.mxu0 0.0
        %743 = vmatmul.mubr.f32.gmra.mrb[0].mxu0 %v629
        %v744 = vpop.f32.mrb[0].mxu0
        %v745 = vadd.f32 0.0, %v744
        %v746 = vpop.f32.mrb[0].mxu0
        %747 = vmatprep.mubr.f32.mxu0 0.0
        %748 = vmatmul.mubr.f32.gmra.mrb[0].mxu0 %v632
        %v749 = vpop.f32.mrb[0].mxu0
        %v750 = vadd.f32 0.0, %v749
        %v751 = vpop.f32.mrb[0].mxu0
        %752 = vmatprep.mubr.f32.mxu0 0.0
        %753 = vmatmul.mubr.f32.gmra.mrb[0].mxu0 %v635
        %v754 = vpop.f32.mrb[0].mxu0
        %v755 = vadd.f32 0.0, %v754
        %v756 = vpop.f32.mrb[0].mxu0
        %757 = vmatprep.mubr.f32.mxu0 0.0
        %758 = vmatmul.mubr.f32.gmra.mrb[0].mxu0 %v638
        %v759 = vpop.f32.mrb[0].mxu0
        %v760 = vadd.f32 0.0, %v759
        %v761 = vpop.f32.mrb[0].mxu0
        %762 = vmatprep.mubr.f32.mxu0 0.0
        %763 = vmatmul.mubr.f32.gmra.mrb[0].mxu0 %v641
        %v764 = vpop.f32.mrb[0].mxu0
        %v765 = vadd.f32 0.0, %v764
        %v766 = vpop.f32.mrb[0].mxu0
        %767 = vmatprep.mubr.f32.mxu0 0.0
        %768 = vmatmul.mubr.f32.gmra.mrb[0].mxu0 %v644
        %v769 = vpop.f32.mrb[0].mxu0
        %v770 = vadd.f32 0.0, %v769
        %v771 = vpop.f32.mrb[0].mxu0
        %772 = vmatprep.mubr.f32.mxu0 0.0
        %773 = vmatmul.mubr.f32.gmra.mrb[0].mxu0 %v647
        %v774 = vpop.f32.mrb[0].mxu0
        %v775 = vadd.f32 0.0, %v774
        %v776 = vpop.f32.mrb[0].mxu0
        %777 = vmatprep.mubr.f32.mxu0 0.0
        %778 = vmatmul.mubr.f32.gmra.mrb[0].mxu0 %v650
        %v779 = vpop.f32.mrb[0].mxu0
        %v780 = vadd.f32 0.0, %v779
        %v781 = vpop.f32.mrb[0].mxu0
        %782 = vmatprep.mubr.f32.mxu0 0.0
        %783 = vmatmul.mubr.f32.gmra.mrb[0].mxu0 %v653
        %v784 = vpop.f32.mrb[0].mxu0
        %v785 = vadd.f32 0.0, %v784
        %v786 = vpop.f32.mrb[0].mxu0
        %787 = vmatprep.mubr.f32.mxu0 0.0
        %788 = vmatmul.mubr.f32.gmra.mrb[0].mxu0 %v656
        %v789 = vpop.f32.mrb[0].mxu0
        %v790 = vadd.f32 0.0, %v789
        %v791 = vpop.f32.mrb[0].mxu0
        %792 = vmatprep.mubr.f32.mxu0 0.0
        %793 = vmatmul.mubr.f32.gmra.mrb[0].mxu0 %v659
        %v794 = vpop.f32.mrb[0].mxu0
        %v795 = vadd.f32 0.0, %v794
        %v796 = vpop.f32.mrb[0].mxu0
        %797 = vmatprep.mubr.f32.mxu0 0.0
        %798 = vmatmul.mubr.f32.gmra.mrb[0].mxu0 %v662
        %v799 = vpop.f32.mrb[0].mxu0
        %v800 = vadd.f32 0.0, %v799
        %v801 = vpop.f32.mrb[0].mxu0
        %802 = vmatprep.mubr.f32.mxu0 0.0
        %803 = vmatmul.mubr.f32.gmra.mrb[0].mxu0 %v665
        %v804 = vpop.f32.mrb[0].mxu0
        %v805 = vadd.f32 0.0, %v804
        %v806 = vpop.f32.mrb[0].mxu0
        %807 = vmatprep.mubr.f32.mxu0 0.0
        %808 = vmatmul.mubr.f32.gmra.mrb[0].mxu0 %v668
        %v809 = vpop.f32.mrb[0].mxu0
        %v810 = vadd.f32 0.0, %v809
        %v811 = vpop.f32.mrb[0].mxu0
        %812 = vmatprep.mubr.f32.mxu0 0.0
        %813 = vmatmul.mubr.f32.gmra.mrb[0].mxu0 %v671
        %v814 = vpop.f32.mrb[0].mxu0
        %v815 = vadd.f32 0.0, %v814
        %v816 = vpop.f32.mrb[0].mxu0
        %817 = vdwg.mxu0
        %v818 = vsel %vm572, %v740, -1e+30
        %v819 = vsel %vm573, %v745, -1e+30
        %v820 = vsel %vm574, %v750, -1e+30
        %v821 = vsel %vm575, %v755, -1e+30
        %v822 = vsel %vm576, %v760, -1e+30
        %v823 = vsel %vm577, %v765, -1e+30
        %v824 = vsel %vm578, %v770, -1e+30
        %v825 = vsel %vm579, %v775, -1e+30
        %v826 = vsel %vm580, %v780, -1e+30
        %v827 = vsel %vm581, %v785, -1e+30
        %v828 = vsel %vm582, %v790, -1e+30
        %v829 = vsel %vm583, %v795, -1e+30
        %v830 = vsel %vm584, %v800, -1e+30
        %v831 = vsel %vm585, %v805, -1e+30
        %v832 = vsel %vm586, %v810, -1e+30
        %v833 = vsel %vm587, %v815, -1e+30
        %v834 = vld [vmem:[#allocation3] sm:$0x1]
        %v835 = vld [vmem:[#allocation4] sm:$0x1]
        %v836 = vmax.f32 %v818, %v822
        %v837 = vmax.f32 %v819, %v823
        %v838 = vmax.f32 %v820, %v824
        %v839 = vmax.f32 %v821, %v825
        %v840 = vmax.f32 %v836, %v826
        %v841 = vmax.f32 %v837, %v827
        %v842 = vmax.f32 %v838, %v828
        %v843 = vmax.f32 %v839, %v829
        %v844 = vmax.f32 %v840, %v830
        %v845 = vmax.f32 %v841, %v831
        %v846 = vmax.f32 %v842, %v832
        %v847 = vmax.f32 %v843, %v833
        %v848 = vmax.f32 %v844, %v845
        %v849 = vmax.f32 %v846, %v847
        %v850 = vmax.f32 %v848, %v849
        %v851 = vrot.slane %v850, 4
        %v852 = vmax.f32 %v850, %v851
        %v853 = vrot.slane %v852, 2
        %v854 = vmax.f32 %v852, %v853
        %v855 = vrot.slane %v854, 1
        %v856 = vmax.f32 %v854, %v855
        %v857 = vmax.f32 %v834, %v856
        %v858 = vsub.f32 %v834, %v857
        %v859 = vmul.f32 %v858, 1.442695
        %v860 = vpow.pop %v859
        %v862 = vlaneseq
        %v863 = vshrl.u32 %v862, 7
        %v864 = vsub.s32 0, %v863
        %v865 = vrot.slane %v857, %v864
        %v867 = vsub.f32 %v818, %v865
        %v868 = vsub.f32 %v819, %v865
        %v869 = vsub.f32 %v820, %v865
        %v870 = vsub.f32 %v821, %v865
        %v871 = vsub.f32 %v822, %v865
        %v872 = vsub.f32 %v823, %v865
        %v873 = vsub.f32 %v824, %v865
        %v874 = vsub.f32 %v825, %v865
        %v875 = vsub.f32 %v826, %v865
        %v876 = vsub.f32 %v827, %v865
        %v877 = vsub.f32 %v828, %v865
        %v878 = vsub.f32 %v829, %v865
        %v879 = vsub.f32 %v830, %v865
        %v880 = vsub.f32 %v831, %v865
        %v881 = vsub.f32 %v832, %v865
        %v882 = vsub.f32 %v833, %v865
        %v883 = vmul.f32 %v867, 1.442695
        %v884 = vpow.pop %v883
        %v885 = vmul.f32 %v868, 1.442695
        %v886 = vpow.pop %v885
        %v887 = vmul.f32 %v869, 1.442695
        %v888 = vpow.pop %v887
        %v889 = vmul.f32 %v870, 1.442695
        %v890 = vpow.pop %v889
        %v891 = vmul.f32 %v871, 1.442695
        %v892 = vpow.pop %v891
        %v893 = vmul.f32 %v872, 1.442695
        %v894 = vpow.pop %v893
        %v895 = vmul.f32 %v873, 1.442695
        %v896 = vpow.pop %v895
        %v897 = vmul.f32 %v874, 1.442695
        %v898 = vpow.pop %v897
        %v899 = vmul.f32 %v875, 1.442695
        %v900 = vpow.pop %v899
        %v901 = vmul.f32 %v876, 1.442695
        %v902 = vpow.pop %v901
        %v903 = vmul.f32 %v877, 1.442695
        %v904 = vpow.pop %v903
        %v905 = vmul.f32 %v878, 1.442695
        %v906 = vpow.pop %v905
        %v907 = vmul.f32 %v879, 1.442695
        %v908 = vpow.pop %v907
        %v909 = vmul.f32 %v880, 1.442695
        %v910 = vpow.pop %v909
        %v911 = vmul.f32 %v881, 1.442695
        %v912 = vpow.pop %v911
        %v913 = vmul.f32 %v882, 1.442695
        %v914 = vpow.pop %v913
        %v915 = vmul.f32 %v860, %v835
        %v916 = vadd.f32 %v884, %v886
        %v917 = vadd.f32 %v916, %v888
        %v918 = vadd.f32 %v917, %v890
        %v919 = vadd.f32 %v918, %v892
        %v920 = vadd.f32 %v919, %v894
        %v921 = vadd.f32 %v920, %v896
        %v922 = vadd.f32 %v921, %v898
        %v923 = vadd.f32 %v922, %v900
        %v924 = vadd.f32 %v923, %v902
        %v925 = vadd.f32 %v924, %v904
        %v926 = vadd.f32 %v925, %v906
        %v927 = vadd.f32 %v926, %v908
        %v928 = vadd.f32 %v927, %v910
        %v929 = vadd.f32 %v928, %v912
        %v930 = vadd.f32 %v929, %v914
        %v931 = vrot.slane %v930, 4
        %v932 = vadd.f32 %v930, %v931
        %v933 = vrot.slane %v932, 2
        %v934 = vadd.f32 %v932, %v933
        %v935 = vrot.slane %v934, 1
        %v936 = vadd.f32 %v934, %v935
        %v937 = vadd.f32 %v915, %v936
        %938 = vst [vmem:[#allocation4] sm:$0x1] %v937
        %939 = vst [vmem:[#allocation3] sm:$0x1] %v857
        %940 = vmatprep.subr.mxu0 0.0
        %941 = vmatpush1.msra.mxu0 %v884
        %942 = vmatprep.subr.mxu0 0.0
        %943 = vmatpush1.msra.mxu0 %v886
        %944 = vmatprep.subr.mxu0 0.0
        %945 = vmatpush1.msra.mxu0 %v888
        %946 = vmatprep.subr.mxu0 0.0
        %947 = vmatpush1.msra.mxu0 %v890
        %948 = vmatprep.subr.mxu0 0.0
        %949 = vmatpush1.msra.mxu0 %v892
        %950 = vmatprep.subr.mxu0 0.0
        %951 = vmatpush1.msra.mxu0 %v894
        %952 = vmatprep.subr.mxu0 0.0
        %953 = vmatpush1.msra.mxu0 %v896
        %954 = vmatprep.subr.mxu0 0.0
        %955 = vmatpush1.msra.mxu0 %v898
        %956 = vmatprep.subr.mxu0 0.0
        %957 = vmatpush1.msra.mxu0 %v900
        %958 = vmatprep.subr.mxu0 0.0
        %959 = vmatpush1.msra.mxu0 %v902
        %960 = vmatprep.subr.mxu0 0.0
        %961 = vmatpush1.msra.mxu0 %v904
        %962 = vmatprep.subr.mxu0 0.0
        %963 = vmatpush1.msra.mxu0 %v906
        %964 = vmatprep.subr.mxu0 0.0
        %965 = vmatpush1.msra.mxu0 %v908
        %966 = vmatprep.subr.mxu0 0.0
        %967 = vmatpush1.msra.mxu0 %v910
        %968 = vmatprep.subr.mxu0 0.0
        %969 = vmatpush1.msra.mxu0 %v912
        %970 = vmatprep.subr.mxu0 0.0
        %971 = vmatpush1.msra.mxu0 %v914
        %972 = vmatprep.subr.mxu0 0.0
        %973 = vmatpush1.msra.mxu0 0.0
        %974 = vmatprep.subr.mxu0 0.0
        %975 = vmatpush1.msra.mxu0 0.0
        %976 = vmatprep.subr.mxu0 0.0
        %977 = vmatpush1.msra.mxu0 0.0
        %978 = vmatprep.subr.mxu0 0.0
        %979 = vmatpush1.msra.mxu0 0.0
        %980 = vmatprep.subr.mxu0 0.0
        %981 = vmatpush1.msra.mxu0 0.0
        %982 = vmatprep.subr.mxu0 0.0
        %983 = vmatpush1.msra.mxu0 0.0
        %984 = vmatprep.subr.mxu0 0.0
        %985 = vmatpush1.msra.mxu0 0.0
        %986 = vmatprep.subr.mxu0 0.0
        %987 = vmatpush1.msra.mxu0 0.0
        %988 = vmatprep.subr.mxu0 0.0
        %989 = vmatpush1.msra.mxu0 0.0
        %990 = vmatprep.subr.mxu0 0.0
        %991 = vmatpush1.msra.mxu0 0.0
        %992 = vmatprep.subr.mxu0 0.0
        %993 = vmatpush1.msra.mxu0 0.0
        %994 = vmatprep.subr.mxu0 0.0
        %995 = vmatpush1.msra.mxu0 0.0
        %996 = vmatprep.subr.mxu0 0.0
        %997 = vmatpush1.msra.mxu0 0.0
        %998 = vmatprep.subr.mxu0 0.0
        %999 = vmatpush1.msra.mxu0 0.0
        %1000 = vmatprep.subr.mxu0 0.0
        %1001 = vmatpush1.msra.mxu0 0.0
        %1002 = vmatprep.subr.mxu0 0.0
        %1003 = vmatpush1.msra.mxu0 0.0
        %1004 = vmatprep.mubr.f32.mxu0 0.0
        %1005 = vmatmul.mubr.f32.gmra.mrb[0].mxu0 %v519
        %v1006 = vpop.f32.mrb[0].mxu0
        %v1007 = vadd.f32 0.0, %v1006
        %v1008 = vpop.f32.mrb[0].mxu0
        %1009 = vdwg.mxu0
        %v1011 = vlaneseq
        %v1012 = vshrl.u32 %v1011, 7
        %v1013 = vsub.s32 0, %v1012
        %v1014 = vrot.slane %v860, %v1013
        %v1016 = vmul.f32 %v588, %v1014
        %v1017 = vadd.f32 %v1016, %v1007
        %1018 = vxpose.xlu0.b32.start [1/16] %v504, 128
        %1019 = vxpose.xlu0.b32.cont [2/16] 0.0, 128
        %1020 = vxpose.xlu0.b32.cont [3/16] 0.0, 128
        %1021 = vxpose.xlu0.b32.cont [4/16] 0.0, 128
        %1022 = vxpose.xlu0.b32.cont [5/16] 0.0, 128
        %1023 = vxpose.xlu0.b32.cont [6/16] 0.0, 128
        %1024 = vxpose.xlu0.b32.cont [7/16] 0.0, 128
        %1025 = vxpose.xlu0.b32.cont [8/16] 0.0, 128
        %1026 = vxpose.xlu0.b32.cont [9/16] 0.0, 128
        %1027 = vxpose.xlu0.b32.cont [10/16] 0.0, 128
        %1028 = vxpose.xlu0.b32.cont [11/16] 0.0, 128
        %1029 = vxpose.xlu0.b32.cont [12/16] 0.0, 128
        %1030 = vxpose.xlu0.b32.cont [13/16] 0.0, 128
        %1031 = vxpose.xlu0.b32.cont [14/16] 0.0, 128
        %1032 = vxpose.xlu0.b32.cont [15/16] 0.0, 128
        %1033 = vxpose.xlu0.b32.end [16/16] 0.0, 128
        %v1034 = vpop.trf.xlu0
        %v1035 = vpop.trf.xlu0
        %v1036 = vpop.trf.xlu0
        %v1037 = vpop.trf.xlu0
        %v1038 = vpop.trf.xlu0
        %v1039 = vpop.trf.xlu0
        %v1040 = vpop.trf.xlu0
        %v1041 = vpop.trf.xlu0
        %v1042 = vpop.trf.xlu0
        %v1043 = vpop.trf.xlu0
        %v1044 = vpop.trf.xlu0
        %v1045 = vpop.trf.xlu0
        %v1046 = vpop.trf.xlu0
        %v1047 = vpop.trf.xlu0
        %v1048 = vpop.trf.xlu0
        %v1049 = vpop.trf.xlu0
        %v1051 = vsel %vm624, %v1034, 0
        %v1054 = vsel %vm624, %v1035, 0
        %v1057 = vsel %vm624, %v1036, 0
        %v1060 = vsel %vm624, %v1037, 0
        %v1063 = vsel %vm624, %v1038, 0
        %v1066 = vsel %vm624, %v1039, 0
        %v1069 = vsel %vm624, %v1040, 0
        %v1072 = vsel %vm624, %v1041, 0
        %v1075 = vsel %vm624, %v1042, 0
        %v1078 = vsel %vm624, %v1043, 0
        %v1081 = vsel %vm624, %v1044, 0
        %v1084 = vsel %vm624, %v1045, 0
        %v1087 = vsel %vm624, %v1046, 0
        %v1090 = vsel %vm624, %v1047, 0
        %v1093 = vsel %vm624, %v1048, 0
        %v1096 = vsel %vm624, %v1049, 0
        %1098 = vmatprep.subr.mxu0 0.0
        %1099 = vmatpush1.msra.mxu0 %v405
        %1100 = vmatprep.subr.mxu0 0.0
        %1101 = vmatpush1.msra.mxu0 0.0
        %1102 = vmatprep.subr.mxu0 0.0
        %1103 = vmatpush1.msra.mxu0 0.0
        %1104 = vmatprep.subr.mxu0 0.0
        %1105 = vmatpush1.msra.mxu0 0.0
        %1106 = vmatprep.subr.mxu0 0.0
        %1107 = vmatpush1.msra.mxu0 0.0
        %1108 = vmatprep.subr.mxu0 0.0
        %1109 = vmatpush1.msra.mxu0 0.0
        %1110 = vmatprep.subr.mxu0 0.0
        %1111 = vmatpush1.msra.mxu0 0.0
        %1112 = vmatprep.subr.mxu0 0.0
        %1113 = vmatpush1.msra.mxu0 0.0
        %1114 = vmatprep.subr.mxu0 0.0
        %1115 = vmatpush1.msra.mxu0 0.0
        %1116 = vmatprep.subr.mxu0 0.0
        %1117 = vmatpush1.msra.mxu0 0.0
        %1118 = vmatprep.subr.mxu0 0.0
        %1119 = vmatpush1.msra.mxu0 0.0
        %1120 = vmatprep.subr.mxu0 0.0
        %1121 = vmatpush1.msra.mxu0 0.0
        %1122 = vmatprep.subr.mxu0 0.0
        %1123 = vmatpush1.msra.mxu0 0.0
        %1124 = vmatprep.subr.mxu0 0.0
        %1125 = vmatpush1.msra.mxu0 0.0
        %1126 = vmatprep.subr.mxu0 0.0
        %1127 = vmatpush1.msra.mxu0 0.0
        %1128 = vmatprep.subr.mxu0 0.0
        %1129 = vmatpush1.msra.mxu0 0.0
        %1130 = vmatprep.subr.mxu0 0.0
        %1131 = vmatpush1.msra.mxu0 0.0
        %1132 = vmatprep.subr.mxu0 0.0
        %1133 = vmatpush1.msra.mxu0 0.0
        %1134 = vmatprep.subr.mxu0 0.0
        %1135 = vmatpush1.msra.mxu0 0.0
        %1136 = vmatprep.subr.mxu0 0.0
        %1137 = vmatpush1.msra.mxu0 0.0
        %1138 = vmatprep.subr.mxu0 0.0
        %1139 = vmatpush1.msra.mxu0 0.0
        %1140 = vmatprep.subr.mxu0 0.0
        %1141 = vmatpush1.msra.mxu0 0.0
        %1142 = vmatprep.subr.mxu0 0.0
        %1143 = vmatpush1.msra.mxu0 0.0
        %1144 = vmatprep.subr.mxu0 0.0
        %1145 = vmatpush1.msra.mxu0 0.0
        %1146 = vmatprep.subr.mxu0 0.0
        %1147 = vmatpush1.msra.mxu0 0.0
        %1148 = vmatprep.subr.mxu0 0.0
        %1149 = vmatpush1.msra.mxu0 0.0
        %1150 = vmatprep.subr.mxu0 0.0
        %1151 = vmatpush1.msra.mxu0 0.0
        %1152 = vmatprep.subr.mxu0 0.0
        %1153 = vmatpush1.msra.mxu0 0.0
        %1154 = vmatprep.subr.mxu0 0.0
        %1155 = vmatpush1.msra.mxu0 0.0
        %1156 = vmatprep.subr.mxu0 0.0
        %1157 = vmatpush1.msra.mxu0 0.0
        %1158 = vmatprep.subr.mxu0 0.0
        %1159 = vmatpush1.msra.mxu0 0.0
        %1160 = vmatprep.subr.mxu0 0.0
        %1161 = vmatpush1.msra.mxu0 0.0
        %1162 = vmatprep.mubr.f32.mxu0 0.0
        %1163 = vmatmul.mubr.f32.gmra.mrb[0].mxu0 %v1051
        %v1164 = vpop.f32.mrb[0].mxu0
        %v1165 = vadd.f32 0.0, %v1164
        %v1166 = vpop.f32.mrb[0].mxu0
        %1167 = vmatprep.mubr.f32.mxu0 0.0
        %1168 = vmatmul.mubr.f32.gmra.mrb[0].mxu0 %v1054
        %v1169 = vpop.f32.mrb[0].mxu0
        %v1170 = vadd.f32 0.0, %v1169
        %v1171 = vpop.f32.mrb[0].mxu0
        %1172 = vmatprep.mubr.f32.mxu0 0.0
        %1173 = vmatmul.mubr.f32.gmra.mrb[0].mxu0 %v1057
        %v1174 = vpop.f32.mrb[0].mxu0
        %v1175 = vadd.f32 0.0, %v1174
        %v1176 = vpop.f32.mrb[0].mxu0
        %1177 = vmatprep.mubr.f32.mxu0 0.0
        %1178 = vmatmul.mubr.f32.gmra.mrb[0].mxu0 %v1060
        %v1179 = vpop.f32.mrb[0].mxu0
        %v1180 = vadd.f32 0.0, %v1179
        %v1181 = vpop.f32.mrb[0].mxu0
        %1182 = vmatprep.mubr.f32.mxu0 0.0
        %1183 = vmatmul.mubr.f32.gmra.mrb[0].mxu0 %v1063
        %v1184 = vpop.f32.mrb[0].mxu0
        %v1185 = vadd.f32 0.0, %v1184
        %v1186 = vpop.f32.mrb[0].mxu0
        %1187 = vmatprep.mubr.f32.mxu0 0.0
        %1188 = vmatmul.mubr.f32.gmra.mrb[0].mxu0 %v1066
        %v1189 = vpop.f32.mrb[0].mxu0
        %v1190 = vadd.f32 0.0, %v1189
        %v1191 = vpop.f32.mrb[0].mxu0
        %1192 = vmatprep.mubr.f32.mxu0 0.0
        %1193 = vmatmul.mubr.f32.gmra.mrb[0].mxu0 %v1069
        %v1194 = vpop.f32.mrb[0].mxu0
        %v1195 = vadd.f32 0.0, %v1194
        %v1196 = vpop.f32.mrb[0].mxu0
        %1197 = vmatprep.mubr.f32.mxu0 0.0
        %1198 = vmatmul.mubr.f32.gmra.mrb[0].mxu0 %v1072
        %v1199 = vpop.f32.mrb[0].mxu0
        %v1200 = vadd.f32 0.0, %v1199
        %v1201 = vpop.f32.mrb[0].mxu0
        %1202 = vmatprep.mubr.f32.mxu0 0.0
        %1203 = vmatmul.mubr.f32.gmra.mrb[0].mxu0 %v1075
        %v1204 = vpop.f32.mrb[0].mxu0
        %v1205 = vadd.f32 0.0, %v1204
        %v1206 = vpop.f32.mrb[0].mxu0
        %1207 = vmatprep.mubr.f32.mxu0 0.0
        %1208 = vmatmul.mubr.f32.gmra.mrb[0].mxu0 %v1078
        %v1209 = vpop.f32.mrb[0].mxu0
        %v1210 = vadd.f32 0.0, %v1209
        %v1211 = vpop.f32.mrb[0].mxu0
        %1212 = vmatprep.mubr.f32.mxu0 0.0
        %1213 = vmatmul.mubr.f32.gmra.mrb[0].mxu0 %v1081
        %v1214 = vpop.f32.mrb[0].mxu0
        %v1215 = vadd.f32 0.0, %v1214
        %v1216 = vpop.f32.mrb[0].mxu0
        %1217 = vmatprep.mubr.f32.mxu0 0.0
        %1218 = vmatmul.mubr.f32.gmra.mrb[0].mxu0 %v1084
        %v1219 = vpop.f32.mrb[0].mxu0
        %v1220 = vadd.f32 0.0, %v1219
        %v1221 = vpop.f32.mrb[0].mxu0
        %1222 = vmatprep.mubr.f32.mxu0 0.0
        %1223 = vmatmul.mubr.f32.gmra.mrb[0].mxu0 %v1087
        %v1224 = vpop.f32.mrb[0].mxu0
        %v1225 = vadd.f32 0.0, %v1224
        %v1226 = vpop.f32.mrb[0].mxu0
        %1227 = vmatprep.mubr.f32.mxu0 0.0
        %1228 = vmatmul.mubr.f32.gmra.mrb[0].mxu0 %v1090
        %v1229 = vpop.f32.mrb[0].mxu0
        %v1230 = vadd.f32 0.0, %v1229
        %v1231 = vpop.f32.mrb[0].mxu0
        %1232 = vmatprep.mubr.f32.mxu0 0.0
        %1233 = vmatmul.mubr.f32.gmra.mrb[0].mxu0 %v1093
        %v1234 = vpop.f32.mrb[0].mxu0
        %v1235 = vadd.f32 0.0, %v1234
        %v1236 = vpop.f32.mrb[0].mxu0
        %1237 = vmatprep.mubr.f32.mxu0 0.0
        %1238 = vmatmul.mubr.f32.gmra.mrb[0].mxu0 %v1096
        %v1239 = vpop.f32.mrb[0].mxu0
        %v1240 = vadd.f32 0.0, %v1239
        %v1241 = vpop.f32.mrb[0].mxu0
        %1242 = vdwg.mxu0
        %v1243 = vsel %vm572, %v1165, -1e+30
        %v1244 = vsel %vm573, %v1170, -1e+30
        %v1245 = vsel %vm574, %v1175, -1e+30
        %v1246 = vsel %vm575, %v1180, -1e+30
        %v1247 = vsel %vm576, %v1185, -1e+30
        %v1248 = vsel %vm577, %v1190, -1e+30
        %v1249 = vsel %vm578, %v1195, -1e+30
        %v1250 = vsel %vm579, %v1200, -1e+30
        %v1251 = vsel %vm580, %v1205, -1e+30
        %v1252 = vsel %vm581, %v1210, -1e+30
        %v1253 = vsel %vm582, %v1215, -1e+30
        %v1254 = vsel %vm583, %v1220, -1e+30
        %v1255 = vsel %vm584, %v1225, -1e+30
        %v1256 = vsel %vm585, %v1230, -1e+30
        %v1257 = vsel %vm586, %v1235, -1e+30
        %v1258 = vsel %vm587, %v1240, -1e+30
        %s1259 = scalar_lea.vmem [#allocation3], 1
        %v1260 = vld [vmem:[%s1259] sm:$0x1]
        %s1261 = scalar_lea.vmem [#allocation4], 1
        %v1262 = vld [vmem:[%s1261] sm:$0x1]
        %v1263 = vmax.f32 %v1243, %v1247
        %v1264 = vmax.f32 %v1244, %v1248
        %v1265 = vmax.f32 %v1245, %v1249
        %v1266 = vmax.f32 %v1246, %v1250
        %v1267 = vmax.f32 %v1263, %v1251
        %v1268 = vmax.f32 %v1264, %v1252
        %v1269 = vmax.f32 %v1265, %v1253
        %v1270 = vmax.f32 %v1266, %v1254
        %v1271 = vmax.f32 %v1267, %v1255
        %v1272 = vmax.f32 %v1268, %v1256
        %v1273 = vmax.f32 %v1269, %v1257
        %v1274 = vmax.f32 %v1270, %v1258
        %v1275 = vmax.f32 %v1271, %v1272
        %v1276 = vmax.f32 %v1273, %v1274
        %v1277 = vmax.f32 %v1275, %v1276
        %v1278 = vrot.slane %v1277, 4
        %v1279 = vmax.f32 %v1277, %v1278
        %v1280 = vrot.slane %v1279, 2
        %v1281 = vmax.f32 %v1279, %v1280
        %v1282 = vrot.slane %v1281, 1
        %v1283 = vmax.f32 %v1281, %v1282
        %v1284 = vmax.f32 %v1260, %v1283
        %v1285 = vsub.f32 %v1260, %v1284
        %v1286 = vmul.f32 %v1285, 1.442695
        %v1287 = vpow.pop %v1286
        %v1289 = vlaneseq
        %v1290 = vshrl.u32 %v1289, 7
        %v1291 = vsub.s32 0, %v1290
        %v1292 = vrot.slane %v1284, %v1291
        %v1294 = vsub.f32 %v1243, %v1292
        %v1295 = vsub.f32 %v1244, %v1292
        %v1296 = vsub.f32 %v1245, %v1292
        %v1297 = vsub.f32 %v1246, %v1292
        %v1298 = vsub.f32 %v1247, %v1292
        %v1299 = vsub.f32 %v1248, %v1292
        %v1300 = vsub.f32 %v1249, %v1292
        %v1301 = vsub.f32 %v1250, %v1292
        %v1302 = vsub.f32 %v1251, %v1292
        %v1303 = vsub.f32 %v1252, %v1292
        %v1304 = vsub.f32 %v1253, %v1292
        %v1305 = vsub.f32 %v1254, %v1292
        %v1306 = vsub.f32 %v1255, %v1292
        %v1307 = vsub.f32 %v1256, %v1292
        %v1308 = vsub.f32 %v1257, %v1292
        %v1309 = vsub.f32 %v1258, %v1292
        %v1310 = vmul.f32 %v1294, 1.442695
        %v1311 = vpow.pop %v1310
        %v1312 = vmul.f32 %v1295, 1.442695
        %v1313 = vpow.pop %v1312
        %v1314 = vmul.f32 %v1296, 1.442695
        %v1315 = vpow.pop %v1314
        %v1316 = vmul.f32 %v1297, 1.442695
        %v1317 = vpow.pop %v1316
        %v1318 = vmul.f32 %v1298, 1.442695
        %v1319 = vpow.pop %v1318
        %v1320 = vmul.f32 %v1299, 1.442695
        %v1321 = vpow.pop %v1320
        %v1322 = vmul.f32 %v1300, 1.442695
        %v1323 = vpow.pop %v1322
        %v1324 = vmul.f32 %v1301, 1.442695
        %v1325 = vpow.pop %v1324
        %v1326 = vmul.f32 %v1302, 1.442695
        %v1327 = vpow.pop %v1326
        %v1328 = vmul.f32 %v1303, 1.442695
        %v1329 = vpow.pop %v1328
        %v1330 = vmul.f32 %v1304, 1.442695
        %v1331 = vpow.pop %v1330
        %v1332 = vmul.f32 %v1305, 1.442695
        %v1333 = vpow.pop %v1332
        %v1334 = vmul.f32 %v1306, 1.442695
        %v1335 = vpow.pop %v1334
        %v1336 = vmul.f32 %v1307, 1.442695
        %v1337 = vpow.pop %v1336
        %v1338 = vmul.f32 %v1308, 1.442695
        %v1339 = vpow.pop %v1338
        %v1340 = vmul.f32 %v1309, 1.442695
        %v1341 = vpow.pop %v1340
        %v1342 = vmul.f32 %v1287, %v1262
        %v1343 = vadd.f32 %v1311, %v1313
        %v1344 = vadd.f32 %v1343, %v1315
        %v1345 = vadd.f32 %v1344, %v1317
        %v1346 = vadd.f32 %v1345, %v1319
        %v1347 = vadd.f32 %v1346, %v1321
        %v1348 = vadd.f32 %v1347, %v1323
        %v1349 = vadd.f32 %v1348, %v1325
        %v1350 = vadd.f32 %v1349, %v1327
        %v1351 = vadd.f32 %v1350, %v1329
        %v1352 = vadd.f32 %v1351, %v1331
        %v1353 = vadd.f32 %v1352, %v1333
        %v1354 = vadd.f32 %v1353, %v1335
        %v1355 = vadd.f32 %v1354, %v1337
        %v1356 = vadd.f32 %v1355, %v1339
        %v1357 = vadd.f32 %v1356, %v1341
        %v1358 = vrot.slane %v1357, 4
        %v1359 = vadd.f32 %v1357, %v1358
        %v1360 = vrot.slane %v1359, 2
        %v1361 = vadd.f32 %v1359, %v1360
        %v1362 = vrot.slane %v1361, 1
        %v1363 = vadd.f32 %v1361, %v1362
        %v1364 = vadd.f32 %v1342, %v1363
        %1365 = vst [vmem:[%s1261] sm:$0x1] %v1364
        %1366 = vst [vmem:[%s1259] sm:$0x1] %v1284
        %1367 = vmatprep.subr.mxu0 0.0
        %1368 = vmatpush1.msra.mxu0 %v1311
        %1369 = vmatprep.subr.mxu0 0.0
        %1370 = vmatpush1.msra.mxu0 %v1313
        %1371 = vmatprep.subr.mxu0 0.0
        %1372 = vmatpush1.msra.mxu0 %v1315
        %1373 = vmatprep.subr.mxu0 0.0
        %1374 = vmatpush1.msra.mxu0 %v1317
        %1375 = vmatprep.subr.mxu0 0.0
        %1376 = vmatpush1.msra.mxu0 %v1319
        %1377 = vmatprep.subr.mxu0 0.0
        %1378 = vmatpush1.msra.mxu0 %v1321
        %1379 = vmatprep.subr.mxu0 0.0
        %1380 = vmatpush1.msra.mxu0 %v1323
        %1381 = vmatprep.subr.mxu0 0.0
        %1382 = vmatpush1.msra.mxu0 %v1325
        %1383 = vmatprep.subr.mxu0 0.0
        %1384 = vmatpush1.msra.mxu0 %v1327
        %1385 = vmatprep.subr.mxu0 0.0
        %1386 = vmatpush1.msra.mxu0 %v1329
        %1387 = vmatprep.subr.mxu0 0.0
        %1388 = vmatpush1.msra.mxu0 %v1331
        %1389 = vmatprep.subr.mxu0 0.0
        %1390 = vmatpush1.msra.mxu0 %v1333
        %1391 = vmatprep.subr.mxu0 0.0
        %1392 = vmatpush1.msra.mxu0 %v1335
        %1393 = vmatprep.subr.mxu0 0.0
        %1394 = vmatpush1.msra.mxu0 %v1337
        %1395 = vmatprep.subr.mxu0 0.0
        %1396 = vmatpush1.msra.mxu0 %v1339
        %1397 = vmatprep.subr.mxu0 0.0
        %1398 = vmatpush1.msra.mxu0 %v1341
        %1399 = vmatprep.subr.mxu0 0.0
        %1400 = vmatpush1.msra.mxu0 0.0
        %1401 = vmatprep.subr.mxu0 0.0
        %1402 = vmatpush1.msra.mxu0 0.0
        %1403 = vmatprep.subr.mxu0 0.0
        %1404 = vmatpush1.msra.mxu0 0.0
        %1405 = vmatprep.subr.mxu0 0.0
        %1406 = vmatpush1.msra.mxu0 0.0
        %1407 = vmatprep.subr.mxu0 0.0
        %1408 = vmatpush1.msra.mxu0 0.0
        %1409 = vmatprep.subr.mxu0 0.0
        %1410 = vmatpush1.msra.mxu0 0.0
        %1411 = vmatprep.subr.mxu0 0.0
        %1412 = vmatpush1.msra.mxu0 0.0
        %1413 = vmatprep.subr.mxu0 0.0
        %1414 = vmatpush1.msra.mxu0 0.0
        %1415 = vmatprep.subr.mxu0 0.0
        %1416 = vmatpush1.msra.mxu0 0.0
        %1417 = vmatprep.subr.mxu0 0.0
        %1418 = vmatpush1.msra.mxu0 0.0
        %1419 = vmatprep.subr.mxu0 0.0
        %1420 = vmatpush1.msra.mxu0 0.0
        %1421 = vmatprep.subr.mxu0 0.0
        %1422 = vmatpush1.msra.mxu0 0.0
        %1423 = vmatprep.subr.mxu0 0.0
        %1424 = vmatpush1.msra.mxu0 0.0
        %1425 = vmatprep.subr.mxu0 0.0
        %1426 = vmatpush1.msra.mxu0 0.0
        %1427 = vmatprep.subr.mxu0 0.0
        %1428 = vmatpush1.msra.mxu0 0.0
        %1429 = vmatprep.subr.mxu0 0.0
        %1430 = vmatpush1.msra.mxu0 0.0
        %1431 = vmatprep.mubr.f32.mxu0 0.0
        %1432 = vmatmul.mubr.f32.gmra.mrb[0].mxu0 %v524
        %v1433 = vpop.f32.mrb[0].mxu0
        %v1434 = vadd.f32 0.0, %v1433
        %v1435 = vpop.f32.mrb[0].mxu0
        %1436 = vdwg.mxu0
        %v1438 = vlaneseq
        %v1439 = vshrl.u32 %v1438, 7
        %v1440 = vsub.s32 0, %v1439
        %v1441 = vrot.slane %v1287, %v1440
        %v1443 = vmul.f32 %v589, %v1441
        %v1444 = vadd.f32 %v1443, %v1434
        %1445 = vxpose.xlu0.b32.start [1/16] %v509, 128
        %1446 = vxpose.xlu0.b32.cont [2/16] 0.0, 128
        %1447 = vxpose.xlu0.b32.cont [3/16] 0.0, 128
        %1448 = vxpose.xlu0.b32.cont [4/16] 0.0, 128
        %1449 = vxpose.xlu0.b32.cont [5/16] 0.0, 128
        %1450 = vxpose.xlu0.b32.cont [6/16] 0.0, 128
        %1451 = vxpose.xlu0.b32.cont [7/16] 0.0, 128
        %1452 = vxpose.xlu0.b32.cont [8/16] 0.0, 128
        %1453 = vxpose.xlu0.b32.cont [9/16] 0.0, 128
        %1454 = vxpose.xlu0.b32.cont [10/16] 0.0, 128
        %1455 = vxpose.xlu0.b32.cont [11/16] 0.0, 128
        %1456 = vxpose.xlu0.b32.cont [12/16] 0.0, 128
        %1457 = vxpose.xlu0.b32.cont [13/16] 0.0, 128
        %1458 = vxpose.xlu0.b32.cont [14/16] 0.0, 128
        %1459 = vxpose.xlu0.b32.cont [15/16] 0.0, 128
        %1460 = vxpose.xlu0.b32.end [16/16] 0.0, 128
        %v1461 = vpop.trf.xlu0
        %v1462 = vpop.trf.xlu0
        %v1463 = vpop.trf.xlu0
        %v1464 = vpop.trf.xlu0
        %v1465 = vpop.trf.xlu0
        %v1466 = vpop.trf.xlu0
        %v1467 = vpop.trf.xlu0
        %v1468 = vpop.trf.xlu0
        %v1469 = vpop.trf.xlu0
        %v1470 = vpop.trf.xlu0
        %v1471 = vpop.trf.xlu0
        %v1472 = vpop.trf.xlu0
        %v1473 = vpop.trf.xlu0
        %v1474 = vpop.trf.xlu0
        %v1475 = vpop.trf.xlu0
        %v1476 = vpop.trf.xlu0
        %v1478 = vsel %vm624, %v1461, 0
        %v1481 = vsel %vm624, %v1462, 0
        %v1484 = vsel %vm624, %v1463, 0
        %v1487 = vsel %vm624, %v1464, 0
        %v1490 = vsel %vm624, %v1465, 0
        %v1493 = vsel %vm624, %v1466, 0
        %v1496 = vsel %vm624, %v1467, 0
        %v1499 = vsel %vm624, %v1468, 0
        %v1502 = vsel %vm624, %v1469, 0
        %v1505 = vsel %vm624, %v1470, 0
        %v1508 = vsel %vm624, %v1471, 0
        %v1511 = vsel %vm624, %v1472, 0
        %v1514 = vsel %vm624, %v1473, 0
        %v1517 = vsel %vm624, %v1474, 0
        %v1520 = vsel %vm624, %v1475, 0
        %v1523 = vsel %vm624, %v1476, 0
        %1525 = vmatprep.subr.mxu0 0.0
        %1526 = vmatpush1.msra.mxu0 %v406
        %1527 = vmatprep.subr.mxu0 0.0
        %1528 = vmatpush1.msra.mxu0 0.0
        %1529 = vmatprep.subr.mxu0 0.0
        %1530 = vmatpush1.msra.mxu0 0.0
        %1531 = vmatprep.subr.mxu0 0.0
        %1532 = vmatpush1.msra.mxu0 0.0
        %1533 = vmatprep.subr.mxu0 0.0
        %1534 = vmatpush1.msra.mxu0 0.0
        %1535 = vmatprep.subr.mxu0 0.0
        %1536 = vmatpush1.msra.mxu0 0.0
        %1537 = vmatprep.subr.mxu0 0.0
        %1538 = vmatpush1.msra.mxu0 0.0
        %1539 = vmatprep.subr.mxu0 0.0
        %1540 = vmatpush1.msra.mxu0 0.0
        %1541 = vmatprep.subr.mxu0 0.0
        %1542 = vmatpush1.msra.mxu0 0.0
        %1543 = vmatprep.subr.mxu0 0.0
        %1544 = vmatpush1.msra.mxu0 0.0
        %1545 = vmatprep.subr.mxu0 0.0
        %1546 = vmatpush1.msra.mxu0 0.0
        %1547 = vmatprep.subr.mxu0 0.0
        %1548 = vmatpush1.msra.mxu0 0.0
        %1549 = vmatprep.subr.mxu0 0.0
        %1550 = vmatpush1.msra.mxu0 0.0
        %1551 = vmatprep.subr.mxu0 0.0
        %1552 = vmatpush1.msra.mxu0 0.0
        %1553 = vmatprep.subr.mxu0 0.0
        %1554 = vmatpush1.msra.mxu0 0.0
        %1555 = vmatprep.subr.mxu0 0.0
        %1556 = vmatpush1.msra.mxu0 0.0
        %1557 = vmatprep.subr.mxu0 0.0
        %1558 = vmatpush1.msra.mxu0 0.0
        %1559 = vmatprep.subr.mxu0 0.0
        %1560 = vmatpush1.msra.mxu0 0.0
        %1561 = vmatprep.subr.mxu0 0.0
        %1562 = vmatpush1.msra.mxu0 0.0
        %1563 = vmatprep.subr.mxu0 0.0
        %1564 = vmatpush1.msra.mxu0 0.0
        %1565 = vmatprep.subr.mxu0 0.0
        %1566 = vmatpush1.msra.mxu0 0.0
        %1567 = vmatprep.subr.mxu0 0.0
        %1568 = vmatpush1.msra.mxu0 0.0
        %1569 = vmatprep.subr.mxu0 0.0
        %1570 = vmatpush1.msra.mxu0 0.0
        %1571 = vmatprep.subr.mxu0 0.0
        %1572 = vmatpush1.msra.mxu0 0.0
        %1573 = vmatprep.subr.mxu0 0.0
        %1574 = vmatpush1.msra.mxu0 0.0
        %1575 = vmatprep.subr.mxu0 0.0
        %1576 = vmatpush1.msra.mxu0 0.0
        %1577 = vmatprep.subr.mxu0 0.0
        %1578 = vmatpush1.msra.mxu0 0.0
        %1579 = vmatprep.subr.mxu0 0.0
        %1580 = vmatpush1.msra.mxu0 0.0
        %1581 = vmatprep.subr.mxu0 0.0
        %1582 = vmatpush1.msra.mxu0 0.0
        %1583 = vmatprep.subr.mxu0 0.0
        %1584 = vmatpush1.msra.mxu0 0.0
        %1585 = vmatprep.subr.mxu0 0.0
        %1586 = vmatpush1.msra.mxu0 0.0
        %1587 = vmatprep.subr.mxu0 0.0
        %1588 = vmatpush1.msra.mxu0 0.0
        %1589 = vmatprep.mubr.f32.mxu0 0.0
        %1590 = vmatmul.mubr.f32.gmra.mrb[0].mxu0 %v1478
        %v1591 = vpop.f32.mrb[0].mxu0
        %v1592 = vadd.f32 0.0, %v1591
        %v1593 = vpop.f32.mrb[0].mxu0
        %1594 = vmatprep.mubr.f32.mxu0 0.0
        %1595 = vmatmul.mubr.f32.gmra.mrb[0].mxu0 %v1481
        %v1596 = vpop.f32.mrb[0].mxu0
        %v1597 = vadd.f32 0.0, %v1596
        %v1598 = vpop.f32.mrb[0].mxu0
        %1599 = vmatprep.mubr.f32.mxu0 0.0
        %1600 = vmatmul.mubr.f32.gmra.mrb[0].mxu0 %v1484
        %v1601 = vpop.f32.mrb[0].mxu0
        %v1602 = vadd.f32 0.0, %v1601
        %v1603 = vpop.f32.mrb[0].mxu0
        %1604 = vmatprep.mubr.f32.mxu0 0.0
        %1605 = vmatmul.mubr.f32.gmra.mrb[0].mxu0 %v1487
        %v1606 = vpop.f32.mrb[0].mxu0
        %v1607 = vadd.f32 0.0, %v1606
        %v1608 = vpop.f32.mrb[0].mxu0
        %1609 = vmatprep.mubr.f32.mxu0 0.0
        %1610 = vmatmul.mubr.f32.gmra.mrb[0].mxu0 %v1490
        %v1611 = vpop.f32.mrb[0].mxu0
        %v1612 = vadd.f32 0.0, %v1611
        %v1613 = vpop.f32.mrb[0].mxu0
        %1614 = vmatprep.mubr.f32.mxu0 0.0
        %1615 = vmatmul.mubr.f32.gmra.mrb[0].mxu0 %v1493
        %v1616 = vpop.f32.mrb[0].mxu0
        %v1617 = vadd.f32 0.0, %v1616
        %v1618 = vpop.f32.mrb[0].mxu0
        %1619 = vmatprep.mubr.f32.mxu0 0.0
        %1620 = vmatmul.mubr.f32.gmra.mrb[0].mxu0 %v1496
        %v1621 = vpop.f32.mrb[0].mxu0
        %v1622 = vadd.f32 0.0, %v1621
        %v1623 = vpop.f32.mrb[0].mxu0
        %1624 = vmatprep.mubr.f32.mxu0 0.0
        %1625 = vmatmul.mubr.f32.gmra.mrb[0].mxu0 %v1499
        %v1626 = vpop.f32.mrb[0].mxu0
        %v1627 = vadd.f32 0.0, %v1626
        %v1628 = vpop.f32.mrb[0].mxu0
        %1629 = vmatprep.mubr.f32.mxu0 0.0
        %1630 = vmatmul.mubr.f32.gmra.mrb[0].mxu0 %v1502
        %v1631 = vpop.f32.mrb[0].mxu0
        %v1632 = vadd.f32 0.0, %v1631
        %v1633 = vpop.f32.mrb[0].mxu0
        %1634 = vmatprep.mubr.f32.mxu0 0.0
        %1635 = vmatmul.mubr.f32.gmra.mrb[0].mxu0 %v1505
        %v1636 = vpop.f32.mrb[0].mxu0
        %v1637 = vadd.f32 0.0, %v1636
        %v1638 = vpop.f32.mrb[0].mxu0
        %1639 = vmatprep.mubr.f32.mxu0 0.0
        %1640 = vmatmul.mubr.f32.gmra.mrb[0].mxu0 %v1508
        %v1641 = vpop.f32.mrb[0].mxu0
        %v1642 = vadd.f32 0.0, %v1641
        %v1643 = vpop.f32.mrb[0].mxu0
        %1644 = vmatprep.mubr.f32.mxu0 0.0
        %1645 = vmatmul.mubr.f32.gmra.mrb[0].mxu0 %v1511
        %v1646 = vpop.f32.mrb[0].mxu0
        %v1647 = vadd.f32 0.0, %v1646
        %v1648 = vpop.f32.mrb[0].mxu0
        %1649 = vmatprep.mubr.f32.mxu0 0.0
        %1650 = vmatmul.mubr.f32.gmra.mrb[0].mxu0 %v1514
        %v1651 = vpop.f32.mrb[0].mxu0
        %v1652 = vadd.f32 0.0, %v1651
        %v1653 = vpop.f32.mrb[0].mxu0
        %1654 = vmatprep.mubr.f32.mxu0 0.0
        %1655 = vmatmul.mubr.f32.gmra.mrb[0].mxu0 %v1517
        %v1656 = vpop.f32.mrb[0].mxu0
        %v1657 = vadd.f32 0.0, %v1656
        %v1658 = vpop.f32.mrb[0].mxu0
        %1659 = vmatprep.mubr.f32.mxu0 0.0
        %1660 = vmatmul.mubr.f32.gmra.mrb[0].mxu0 %v1520
        %v1661 = vpop.f32.mrb[0].mxu0
        %v1662 = vadd.f32 0.0, %v1661
        %v1663 = vpop.f32.mrb[0].mxu0
        %1664 = vmatprep.mubr.f32.mxu0 0.0
        %1665 = vmatmul.mubr.f32.gmra.mrb[0].mxu0 %v1523
        %v1666 = vpop.f32.mrb[0].mxu0
        %v1667 = vadd.f32 0.0, %v1666
        %v1668 = vpop.f32.mrb[0].mxu0
        %1669 = vdwg.mxu0
        %v1670 = vsel %vm572, %v1592, -1e+30
        %v1671 = vsel %vm573, %v1597, -1e+30
        %v1672 = vsel %vm574, %v1602, -1e+30
        %v1673 = vsel %vm575, %v1607, -1e+30
        %v1674 = vsel %vm576, %v1612, -1e+30
        %v1675 = vsel %vm577, %v1617, -1e+30
        %v1676 = vsel %vm578, %v1622, -1e+30
        %v1677 = vsel %vm579, %v1627, -1e+30
        %v1678 = vsel %vm580, %v1632, -1e+30
        %v1679 = vsel %vm581, %v1637, -1e+30
        %v1680 = vsel %vm582, %v1642, -1e+30
        %v1681 = vsel %vm583, %v1647, -1e+30
        %v1682 = vsel %vm584, %v1652, -1e+30
        %v1683 = vsel %vm585, %v1657, -1e+30
        %v1684 = vsel %vm586, %v1662, -1e+30
        %v1685 = vsel %vm587, %v1667, -1e+30
        %s1686 = scalar_lea.vmem [#allocation3], 2
        %v1687 = vld [vmem:[%s1686] sm:$0x1]
        %s1688 = scalar_lea.vmem [#allocation4], 2
        %v1689 = vld [vmem:[%s1688] sm:$0x1]
        %v1690 = vmax.f32 %v1670, %v1674
        %v1691 = vmax.f32 %v1671, %v1675
        %v1692 = vmax.f32 %v1672, %v1676
        %v1693 = vmax.f32 %v1673, %v1677
        %v1694 = vmax.f32 %v1690, %v1678
        %v1695 = vmax.f32 %v1691, %v1679
        %v1696 = vmax.f32 %v1692, %v1680
        %v1697 = vmax.f32 %v1693, %v1681
        %v1698 = vmax.f32 %v1694, %v1682
        %v1699 = vmax.f32 %v1695, %v1683
        %v1700 = vmax.f32 %v1696, %v1684
        %v1701 = vmax.f32 %v1697, %v1685
        %v1702 = vmax.f32 %v1698, %v1699
        %v1703 = vmax.f32 %v1700, %v1701
        %v1704 = vmax.f32 %v1702, %v1703
        %v1705 = vrot.slane %v1704, 4
        %v1706 = vmax.f32 %v1704, %v1705
        %v1707 = vrot.slane %v1706, 2
        %v1708 = vmax.f32 %v1706, %v1707
        %v1709 = vrot.slane %v1708, 1
        %v1710 = vmax.f32 %v1708, %v1709
        %v1711 = vmax.f32 %v1687, %v1710
        %v1712 = vsub.f32 %v1687, %v1711
        %v1713 = vmul.f32 %v1712, 1.442695
        %v1714 = vpow.pop %v1713
        %v1716 = vlaneseq
        %v1717 = vshrl.u32 %v1716, 7
        %v1718 = vsub.s32 0, %v1717
        %v1719 = vrot.slane %v1711, %v1718
        %v1721 = vsub.f32 %v1670, %v1719
        %v1722 = vsub.f32 %v1671, %v1719
        %v1723 = vsub.f32 %v1672, %v1719
        %v1724 = vsub.f32 %v1673, %v1719
        %v1725 = vsub.f32 %v1674, %v1719
        %v1726 = vsub.f32 %v1675, %v1719
        %v1727 = vsub.f32 %v1676, %v1719
        %v1728 = vsub.f32 %v1677, %v1719
        %v1729 = vsub.f32 %v1678, %v1719
        %v1730 = vsub.f32 %v1679, %v1719
        %v1731 = vsub.f32 %v1680, %v1719
        %v1732 = vsub.f32 %v1681, %v1719
        %v1733 = vsub.f32 %v1682, %v1719
        %v1734 = vsub.f32 %v1683, %v1719
        %v1735 = vsub.f32 %v1684, %v1719
        %v1736 = vsub.f32 %v1685, %v1719
        %v1737 = vmul.f32 %v1721, 1.442695
        %v1738 = vpow.pop %v1737
        %v1739 = vmul.f32 %v1722, 1.442695
        %v1740 = vpow.pop %v1739
        %v1741 = vmul.f32 %v1723, 1.442695
        %v1742 = vpow.pop %v1741
        %v1743 = vmul.f32 %v1724, 1.442695
        %v1744 = vpow.pop %v1743
        %v1745 = vmul.f32 %v1725, 1.442695
        %v1746 = vpow.pop %v1745
        %v1747 = vmul.f32 %v1726, 1.442695
        %v1748 = vpow.pop %v1747
        %v1749 = vmul.f32 %v1727, 1.442695
        %v1750 = vpow.pop %v1749
        %v1751 = vmul.f32 %v1728, 1.442695
        %v1752 = vpow.pop %v1751
        %v1753 = vmul.f32 %v1729, 1.442695
        %v1754 = vpow.pop %v1753
        %v1755 = vmul.f32 %v1730, 1.442695
        %v1756 = vpow.pop %v1755
        %v1757 = vmul.f32 %v1731, 1.442695
        %v1758 = vpow.pop %v1757
        %v1759 = vmul.f32 %v1732, 1.442695
        %v1760 = vpow.pop %v1759
        %v1761 = vmul.f32 %v1733, 1.442695
        %v1762 = vpow.pop %v1761
        %v1763 = vmul.f32 %v1734, 1.442695
        %v1764 = vpow.pop %v1763
        %v1765 = vmul.f32 %v1735, 1.442695
        %v1766 = vpow.pop %v1765
        %v1767 = vmul.f32 %v1736, 1.442695
        %v1768 = vpow.pop %v1767
        %v1769 = vmul.f32 %v1714, %v1689
        %v1770 = vadd.f32 %v1738, %v1740
        %v1771 = vadd.f32 %v1770, %v1742
        %v1772 = vadd.f32 %v1771, %v1744
        %v1773 = vadd.f32 %v1772, %v1746
        %v1774 = vadd.f32 %v1773, %v1748
        %v1775 = vadd.f32 %v1774, %v1750
        %v1776 = vadd.f32 %v1775, %v1752
        %v1777 = vadd.f32 %v1776, %v1754
        %v1778 = vadd.f32 %v1777, %v1756
        %v1779 = vadd.f32 %v1778, %v1758
        %v1780 = vadd.f32 %v1779, %v1760
        %v1781 = vadd.f32 %v1780, %v1762
        %v1782 = vadd.f32 %v1781, %v1764
        %v1783 = vadd.f32 %v1782, %v1766
        %v1784 = vadd.f32 %v1783, %v1768
        %v1785 = vrot.slane %v1784, 4
        %v1786 = vadd.f32 %v1784, %v1785
        %v1787 = vrot.slane %v1786, 2
        %v1788 = vadd.f32 %v1786, %v1787
        %v1789 = vrot.slane %v1788, 1
        %v1790 = vadd.f32 %v1788, %v1789
        %v1791 = vadd.f32 %v1769, %v1790
        %1792 = vst [vmem:[%s1688] sm:$0x1] %v1791
        %1793 = vst [vmem:[%s1686] sm:$0x1] %v1711
        %1794 = vmatprep.subr.mxu0 0.0
        %1795 = vmatpush1.msra.mxu0 %v1738
        %1796 = vmatprep.subr.mxu0 0.0
        %1797 = vmatpush1.msra.mxu0 %v1740
        %1798 = vmatprep.subr.mxu0 0.0
        %1799 = vmatpush1.msra.mxu0 %v1742
        %1800 = vmatprep.subr.mxu0 0.0
        %1801 = vmatpush1.msra.mxu0 %v1744
        %1802 = vmatprep.subr.mxu0 0.0
        %1803 = vmatpush1.msra.mxu0 %v1746
        %1804 = vmatprep.subr.mxu0 0.0
        %1805 = vmatpush1.msra.mxu0 %v1748
        %1806 = vmatprep.subr.mxu0 0.0
        %1807 = vmatpush1.msra.mxu0 %v1750
        %1808 = vmatprep.subr.mxu0 0.0
        %1809 = vmatpush1.msra.mxu0 %v1752
        %1810 = vmatprep.subr.mxu0 0.0
        %1811 = vmatpush1.msra.mxu0 %v1754
        %1812 = vmatprep.subr.mxu0 0.0
        %1813 = vmatpush1.msra.mxu0 %v1756
        %1814 = vmatprep.subr.mxu0 0.0
        %1815 = vmatpush1.msra.mxu0 %v1758
        %1816 = vmatprep.subr.mxu0 0.0
        %1817 = vmatpush1.msra.mxu0 %v1760
        %1818 = vmatprep.subr.mxu0 0.0
        %1819 = vmatpush1.msra.mxu0 %v1762
        %1820 = vmatprep.subr.mxu0 0.0
        %1821 = vmatpush1.msra.mxu0 %v1764
        %1822 = vmatprep.subr.mxu0 0.0
        %1823 = vmatpush1.msra.mxu0 %v1766
        %1824 = vmatprep.subr.mxu0 0.0
        %1825 = vmatpush1.msra.mxu0 %v1768
        %1826 = vmatprep.subr.mxu0 0.0
        %1827 = vmatpush1.msra.mxu0 0.0
        %1828 = vmatprep.subr.mxu0 0.0
        %1829 = vmatpush1.msra.mxu0 0.0
        %1830 = vmatprep.subr.mxu0 0.0
        %1831 = vmatpush1.msra.mxu0 0.0
        %1832 = vmatprep.subr.mxu0 0.0
        %1833 = vmatpush1.msra.mxu0 0.0
        %1834 = vmatprep.subr.mxu0 0.0
        %1835 = vmatpush1.msra.mxu0 0.0
        %1836 = vmatprep.subr.mxu0 0.0
        %1837 = vmatpush1.msra.mxu0 0.0
        %1838 = vmatprep.subr.mxu0 0.0
        %1839 = vmatpush1.msra.mxu0 0.0
        %1840 = vmatprep.subr.mxu0 0.0
        %1841 = vmatpush1.msra.mxu0 0.0
        %1842 = vmatprep.subr.mxu0 0.0
        %1843 = vmatpush1.msra.mxu0 0.0
        %1844 = vmatprep.subr.mxu0 0.0
        %1845 = vmatpush1.msra.mxu0 0.0
        %1846 = vmatprep.subr.mxu0 0.0
        %1847 = vmatpush1.msra.mxu0 0.0
        %1848 = vmatprep.subr.mxu0 0.0
        %1849 = vmatpush1.msra.mxu0 0.0
        %1850 = vmatprep.subr.mxu0 0.0
        %1851 = vmatpush1.msra.mxu0 0.0
        %1852 = vmatprep.subr.mxu0 0.0
        %1853 = vmatpush1.msra.mxu0 0.0
        %1854 = vmatprep.subr.mxu0 0.0
        %1855 = vmatpush1.msra.mxu0 0.0
        %1856 = vmatprep.subr.mxu0 0.0
        %1857 = vmatpush1.msra.mxu0 0.0
        %1858 = vmatprep.mubr.f32.mxu0 0.0
        %1859 = vmatmul.mubr.f32.gmra.mrb[0].mxu0 %v529
        %v1860 = vpop.f32.mrb[0].mxu0
        %v1861 = vadd.f32 0.0, %v1860
        %v1862 = vpop.f32.mrb[0].mxu0
        %1863 = vdwg.mxu0
        %v1865 = vlaneseq
        %v1866 = vshrl.u32 %v1865, 7
        %v1867 = vsub.s32 0, %v1866
        %v1868 = vrot.slane %v1714, %v1867
        %v1870 = vmul.f32 %v590, %v1868
        %v1871 = vadd.f32 %v1870, %v1861
        %1872 = vxpose.xlu0.b32.start [1/16] %v514, 128
        %1873 = vxpose.xlu0.b32.cont [2/16] 0.0, 128
        %1874 = vxpose.xlu0.b32.cont [3/16] 0.0, 128
        %1875 = vxpose.xlu0.b32.cont [4/16] 0.0, 128
        %1876 = vxpose.xlu0.b32.cont [5/16] 0.0, 128
        %1877 = vxpose.xlu0.b32.cont [6/16] 0.0, 128
        %1878 = vxpose.xlu0.b32.cont [7/16] 0.0, 128
        %1879 = vxpose.xlu0.b32.cont [8/16] 0.0, 128
        %1880 = vxpose.xlu0.b32.cont [9/16] 0.0, 128
        %1881 = vxpose.xlu0.b32.cont [10/16] 0.0, 128
        %1882 = vxpose.xlu0.b32.cont [11/16] 0.0, 128
        %1883 = vxpose.xlu0.b32.cont [12/16] 0.0, 128
        %1884 = vxpose.xlu0.b32.cont [13/16] 0.0, 128
        %1885 = vxpose.xlu0.b32.cont [14/16] 0.0, 128
        %1886 = vxpose.xlu0.b32.cont [15/16] 0.0, 128
        %1887 = vxpose.xlu0.b32.end [16/16] 0.0, 128
        %v1888 = vpop.trf.xlu0
        %v1889 = vpop.trf.xlu0
        %v1890 = vpop.trf.xlu0
        %v1891 = vpop.trf.xlu0
        %v1892 = vpop.trf.xlu0
        %v1893 = vpop.trf.xlu0
        %v1894 = vpop.trf.xlu0
        %v1895 = vpop.trf.xlu0
        %v1896 = vpop.trf.xlu0
        %v1897 = vpop.trf.xlu0
        %v1898 = vpop.trf.xlu0
        %v1899 = vpop.trf.xlu0
        %v1900 = vpop.trf.xlu0
        %v1901 = vpop.trf.xlu0
        %v1902 = vpop.trf.xlu0
        %v1903 = vpop.trf.xlu0
        %v1905 = vsel %vm624, %v1888, 0
        %v1908 = vsel %vm624, %v1889, 0
        %v1911 = vsel %vm624, %v1890, 0
        %v1914 = vsel %vm624, %v1891, 0
        %v1917 = vsel %vm624, %v1892, 0
        %v1920 = vsel %vm624, %v1893, 0
        %v1923 = vsel %vm624, %v1894, 0
        %v1926 = vsel %vm624, %v1895, 0
        %v1929 = vsel %vm624, %v1896, 0
        %v1932 = vsel %vm624, %v1897, 0
        %v1935 = vsel %vm624, %v1898, 0
        %v1938 = vsel %vm624, %v1899, 0
        %v1941 = vsel %vm624, %v1900, 0
        %v1944 = vsel %vm624, %v1901, 0
        %v1947 = vsel %vm624, %v1902, 0
        %v1950 = vsel %vm624, %v1903, 0
        %1952 = vmatprep.subr.mxu0 0.0
        %1953 = vmatpush1.msra.mxu0 %v407
        %1954 = vmatprep.subr.mxu0 0.0
        %1955 = vmatpush1.msra.mxu0 0.0
        %1956 = vmatprep.subr.mxu0 0.0
        %1957 = vmatpush1.msra.mxu0 0.0
        %1958 = vmatprep.subr.mxu0 0.0
        %1959 = vmatpush1.msra.mxu0 0.0
        %1960 = vmatprep.subr.mxu0 0.0
        %1961 = vmatpush1.msra.mxu0 0.0
        %1962 = vmatprep.subr.mxu0 0.0
        %1963 = vmatpush1.msra.mxu0 0.0
        %1964 = vmatprep.subr.mxu0 0.0
        %1965 = vmatpush1.msra.mxu0 0.0
        %1966 = vmatprep.subr.mxu0 0.0
        %1967 = vmatpush1.msra.mxu0 0.0
        %1968 = vmatprep.subr.mxu0 0.0
        %1969 = vmatpush1.msra.mxu0 0.0
        %1970 = vmatprep.subr.mxu0 0.0
        %1971 = vmatpush1.msra.mxu0 0.0
        %1972 = vmatprep.subr.mxu0 0.0
        %1973 = vmatpush1.msra.mxu0 0.0
        %1974 = vmatprep.subr.mxu0 0.0
        %1975 = vmatpush1.msra.mxu0 0.0
        %1976 = vmatprep.subr.mxu0 0.0
        %1977 = vmatpush1.msra.mxu0 0.0
        %1978 = vmatprep.subr.mxu0 0.0
        %1979 = vmatpush1.msra.mxu0 0.0
        %1980 = vmatprep.subr.mxu0 0.0
        %1981 = vmatpush1.msra.mxu0 0.0
        %1982 = vmatprep.subr.mxu0 0.0
        %1983 = vmatpush1.msra.mxu0 0.0
        %1984 = vmatprep.subr.mxu0 0.0
        %1985 = vmatpush1.msra.mxu0 0.0
        %1986 = vmatprep.subr.mxu0 0.0
        %1987 = vmatpush1.msra.mxu0 0.0
        %1988 = vmatprep.subr.mxu0 0.0
        %1989 = vmatpush1.msra.mxu0 0.0
        %1990 = vmatprep.subr.mxu0 0.0
        %1991 = vmatpush1.msra.mxu0 0.0
        %1992 = vmatprep.subr.mxu0 0.0
        %1993 = vmatpush1.msra.mxu0 0.0
        %1994 = vmatprep.subr.mxu0 0.0
        %1995 = vmatpush1.msra.mxu0 0.0
        %1996 = vmatprep.subr.mxu0 0.0
        %1997 = vmatpush1.msra.mxu0 0.0
        %1998 = vmatprep.subr.mxu0 0.0
        %1999 = vmatpush1.msra.mxu0 0.0
        %2000 = vmatprep.subr.mxu0 0.0
        %2001 = vmatpush1.msra.mxu0 0.0
        %2002 = vmatprep.subr.mxu0 0.0
        %2003 = vmatpush1.msra.mxu0 0.0
        %2004 = vmatprep.subr.mxu0 0.0
        %2005 = vmatpush1.msra.mxu0 0.0
        %2006 = vmatprep.subr.mxu0 0.0
        %2007 = vmatpush1.msra.mxu0 0.0
        %2008 = vmatprep.subr.mxu0 0.0
        %2009 = vmatpush1.msra.mxu0 0.0
        %2010 = vmatprep.subr.mxu0 0.0
        %2011 = vmatpush1.msra.mxu0 0.0
        %2012 = vmatprep.subr.mxu0 0.0
        %2013 = vmatpush1.msra.mxu0 0.0
        %2014 = vmatprep.subr.mxu0 0.0
        %2015 = vmatpush1.msra.mxu0 0.0
        %2016 = vmatprep.mubr.f32.mxu0 0.0
        %2017 = vmatmul.mubr.f32.gmra.mrb[0].mxu0 %v1905
        %v2018 = vpop.f32.mrb[0].mxu0
        %v2019 = vadd.f32 0.0, %v2018
        %v2020 = vpop.f32.mrb[0].mxu0
        %2021 = vmatprep.mubr.f32.mxu0 0.0
        %2022 = vmatmul.mubr.f32.gmra.mrb[0].mxu0 %v1908
        %v2023 = vpop.f32.mrb[0].mxu0
        %v2024 = vadd.f32 0.0, %v2023
        %v2025 = vpop.f32.mrb[0].mxu0
        %2026 = vmatprep.mubr.f32.mxu0 0.0
        %2027 = vmatmul.mubr.f32.gmra.mrb[0].mxu0 %v1911
        %v2028 = vpop.f32.mrb[0].mxu0
        %v2029 = vadd.f32 0.0, %v2028
        %v2030 = vpop.f32.mrb[0].mxu0
        %2031 = vmatprep.mubr.f32.mxu0 0.0
        %2032 = vmatmul.mubr.f32.gmra.mrb[0].mxu0 %v1914
        %v2033 = vpop.f32.mrb[0].mxu0
        %v2034 = vadd.f32 0.0, %v2033
        %v2035 = vpop.f32.mrb[0].mxu0
        %2036 = vmatprep.mubr.f32.mxu0 0.0
        %2037 = vmatmul.mubr.f32.gmra.mrb[0].mxu0 %v1917
        %v2038 = vpop.f32.mrb[0].mxu0
        %v2039 = vadd.f32 0.0, %v2038
        %v2040 = vpop.f32.mrb[0].mxu0
        %2041 = vmatprep.mubr.f32.mxu0 0.0
        %2042 = vmatmul.mubr.f32.gmra.mrb[0].mxu0 %v1920
        %v2043 = vpop.f32.mrb[0].mxu0
        %v2044 = vadd.f32 0.0, %v2043
        %v2045 = vpop.f32.mrb[0].mxu0
        %2046 = vmatprep.mubr.f32.mxu0 0.0
        %2047 = vmatmul.mubr.f32.gmra.mrb[0].mxu0 %v1923
        %v2048 = vpop.f32.mrb[0].mxu0
        %v2049 = vadd.f32 0.0, %v2048
        %v2050 = vpop.f32.mrb[0].mxu0
        %2051 = vmatprep.mubr.f32.mxu0 0.0
        %2052 = vmatmul.mubr.f32.gmra.mrb[0].mxu0 %v1926
        %v2053 = vpop.f32.mrb[0].mxu0
        %v2054 = vadd.f32 0.0, %v2053
        %v2055 = vpop.f32.mrb[0].mxu0
        %2056 = vmatprep.mubr.f32.mxu0 0.0
        %2057 = vmatmul.mubr.f32.gmra.mrb[0].mxu0 %v1929
        %v2058 = vpop.f32.mrb[0].mxu0
        %v2059 = vadd.f32 0.0, %v2058
        %v2060 = vpop.f32.mrb[0].mxu0
        %2061 = vmatprep.mubr.f32.mxu0 0.0
        %2062 = vmatmul.mubr.f32.gmra.mrb[0].mxu0 %v1932
        %v2063 = vpop.f32.mrb[0].mxu0
        %v2064 = vadd.f32 0.0, %v2063
        %v2065 = vpop.f32.mrb[0].mxu0
        %2066 = vmatprep.mubr.f32.mxu0 0.0
        %2067 = vmatmul.mubr.f32.gmra.mrb[0].mxu0 %v1935
        %v2068 = vpop.f32.mrb[0].mxu0
        %v2069 = vadd.f32 0.0, %v2068
        %v2070 = vpop.f32.mrb[0].mxu0
        %2071 = vmatprep.mubr.f32.mxu0 0.0
        %2072 = vmatmul.mubr.f32.gmra.mrb[0].mxu0 %v1938
        %v2073 = vpop.f32.mrb[0].mxu0
        %v2074 = vadd.f32 0.0, %v2073
        %v2075 = vpop.f32.mrb[0].mxu0
        %2076 = vmatprep.mubr.f32.mxu0 0.0
        %2077 = vmatmul.mubr.f32.gmra.mrb[0].mxu0 %v1941
        %v2078 = vpop.f32.mrb[0].mxu0
        %v2079 = vadd.f32 0.0, %v2078
        %v2080 = vpop.f32.mrb[0].mxu0
        %2081 = vmatprep.mubr.f32.mxu0 0.0
        %2082 = vmatmul.mubr.f32.gmra.mrb[0].mxu0 %v1944
        %v2083 = vpop.f32.mrb[0].mxu0
        %v2084 = vadd.f32 0.0, %v2083
        %v2085 = vpop.f32.mrb[0].mxu0
        %2086 = vmatprep.mubr.f32.mxu0 0.0
        %2087 = vmatmul.mubr.f32.gmra.mrb[0].mxu0 %v1947
        %v2088 = vpop.f32.mrb[0].mxu0
        %v2089 = vadd.f32 0.0, %v2088
        %v2090 = vpop.f32.mrb[0].mxu0
        %2091 = vmatprep.mubr.f32.mxu0 0.0
        %2092 = vmatmul.mubr.f32.gmra.mrb[0].mxu0 %v1950
        %v2093 = vpop.f32.mrb[0].mxu0
        %v2094 = vadd.f32 0.0, %v2093
        %v2095 = vpop.f32.mrb[0].mxu0
        %2096 = vdwg.mxu0
        %v2097 = vsel %vm572, %v2019, -1e+30
        %v2098 = vsel %vm573, %v2024, -1e+30
        %v2099 = vsel %vm574, %v2029, -1e+30
        %v2100 = vsel %vm575, %v2034, -1e+30
        %v2101 = vsel %vm576, %v2039, -1e+30
        %v2102 = vsel %vm577, %v2044, -1e+30
        %v2103 = vsel %vm578, %v2049, -1e+30
        %v2104 = vsel %vm579, %v2054, -1e+30
        %v2105 = vsel %vm580, %v2059, -1e+30
        %v2106 = vsel %vm581, %v2064, -1e+30
        %v2107 = vsel %vm582, %v2069, -1e+30
        %v2108 = vsel %vm583, %v2074, -1e+30
        %v2109 = vsel %vm584, %v2079, -1e+30
        %v2110 = vsel %vm585, %v2084, -1e+30
        %v2111 = vsel %vm586, %v2089, -1e+30
        %v2112 = vsel %vm587, %v2094, -1e+30
        %s2113 = scalar_lea.vmem [#allocation3], 3
        %v2114 = vld [vmem:[%s2113] sm:$0x1]
        %s2115 = scalar_lea.vmem [#allocation4], 3
        %v2116 = vld [vmem:[%s2115] sm:$0x1]
        %v2117 = vmax.f32 %v2097, %v2101
        %v2118 = vmax.f32 %v2098, %v2102
        %v2119 = vmax.f32 %v2099, %v2103
        %v2120 = vmax.f32 %v2100, %v2104
        %v2121 = vmax.f32 %v2117, %v2105
        %v2122 = vmax.f32 %v2118, %v2106
        %v2123 = vmax.f32 %v2119, %v2107
        %v2124 = vmax.f32 %v2120, %v2108
        %v2125 = vmax.f32 %v2121, %v2109
        %v2126 = vmax.f32 %v2122, %v2110
        %v2127 = vmax.f32 %v2123, %v2111
        %v2128 = vmax.f32 %v2124, %v2112
        %v2129 = vmax.f32 %v2125, %v2126
        %v2130 = vmax.f32 %v2127, %v2128
        %v2131 = vmax.f32 %v2129, %v2130
        %v2132 = vrot.slane %v2131, 4
        %v2133 = vmax.f32 %v2131, %v2132
        %v2134 = vrot.slane %v2133, 2
        %v2135 = vmax.f32 %v2133, %v2134
        %v2136 = vrot.slane %v2135, 1
        %v2137 = vmax.f32 %v2135, %v2136
        %v2138 = vmax.f32 %v2114, %v2137
        %v2139 = vsub.f32 %v2114, %v2138
        %v2140 = vmul.f32 %v2139, 1.442695
        %v2141 = vpow.pop %v2140
        %v2143 = vlaneseq
        %v2144 = vshrl.u32 %v2143, 7
        %v2145 = vsub.s32 0, %v2144
        %v2146 = vrot.slane %v2138, %v2145
        %v2148 = vsub.f32 %v2097, %v2146
        %v2149 = vsub.f32 %v2098, %v2146
        %v2150 = vsub.f32 %v2099, %v2146
        %v2151 = vsub.f32 %v2100, %v2146
        %v2152 = vsub.f32 %v2101, %v2146
        %v2153 = vsub.f32 %v2102, %v2146
        %v2154 = vsub.f32 %v2103, %v2146
        %v2155 = vsub.f32 %v2104, %v2146
        %v2156 = vsub.f32 %v2105, %v2146
        %v2157 = vsub.f32 %v2106, %v2146
        %v2158 = vsub.f32 %v2107, %v2146
        %v2159 = vsub.f32 %v2108, %v2146
        %v2160 = vsub.f32 %v2109, %v2146
        %v2161 = vsub.f32 %v2110, %v2146
        %v2162 = vsub.f32 %v2111, %v2146
        %v2163 = vsub.f32 %v2112, %v2146
        %v2164 = vmul.f32 %v2148, 1.442695
        %v2165 = vpow.pop %v2164
        %v2166 = vmul.f32 %v2149, 1.442695
        %v2167 = vpow.pop %v2166
        %v2168 = vmul.f32 %v2150, 1.442695
        %v2169 = vpow.pop %v2168
        %v2170 = vmul.f32 %v2151, 1.442695
        %v2171 = vpow.pop %v2170
        %v2172 = vmul.f32 %v2152, 1.442695
        %v2173 = vpow.pop %v2172
        %v2174 = vmul.f32 %v2153, 1.442695
        %v2175 = vpow.pop %v2174
        %v2176 = vmul.f32 %v2154, 1.442695
        %v2177 = vpow.pop %v2176
        %v2178 = vmul.f32 %v2155, 1.442695
        %v2179 = vpow.pop %v2178
        %v2180 = vmul.f32 %v2156, 1.442695
        %v2181 = vpow.pop %v2180
        %v2182 = vmul.f32 %v2157, 1.442695
        %v2183 = vpow.pop %v2182
        %v2184 = vmul.f32 %v2158, 1.442695
        %v2185 = vpow.pop %v2184
        %v2186 = vmul.f32 %v2159, 1.442695
        %v2187 = vpow.pop %v2186
        %v2188 = vmul.f32 %v2160, 1.442695
        %v2189 = vpow.pop %v2188
        %v2190 = vmul.f32 %v2161, 1.442695
        %v2191 = vpow.pop %v2190
        %v2192 = vmul.f32 %v2162, 1.442695
        %v2193 = vpow.pop %v2192
        %v2194 = vmul.f32 %v2163, 1.442695
        %v2195 = vpow.pop %v2194
        %v2196 = vmul.f32 %v2141, %v2116
        %v2197 = vadd.f32 %v2165, %v2167
        %v2198 = vadd.f32 %v2197, %v2169
        %v2199 = vadd.f32 %v2198, %v2171
        %v2200 = vadd.f32 %v2199, %v2173
        %v2201 = vadd.f32 %v2200, %v2175
        %v2202 = vadd.f32 %v2201, %v2177
        %v2203 = vadd.f32 %v2202, %v2179
        %v2204 = vadd.f32 %v2203, %v2181
        %v2205 = vadd.f32 %v2204, %v2183
        %v2206 = vadd.f32 %v2205, %v2185
        %v2207 = vadd.f32 %v2206, %v2187
        %v2208 = vadd.f32 %v2207, %v2189
        %v2209 = vadd.f32 %v2208, %v2191
        %v2210 = vadd.f32 %v2209, %v2193
        %v2211 = vadd.f32 %v2210, %v2195
        %v2212 = vrot.slane %v2211, 4
        %v2213 = vadd.f32 %v2211, %v2212
        %v2214 = vrot.slane %v2213, 2
        %v2215 = vadd.f32 %v2213, %v2214
        %v2216 = vrot.slane %v2215, 1
        %v2217 = vadd.f32 %v2215, %v2216
        %v2218 = vadd.f32 %v2196, %v2217
        %2219 = vst [vmem:[%s2115] sm:$0x1] %v2218
        %2220 = vst [vmem:[%s2113] sm:$0x1] %v2138
        %2221 = vmatprep.subr.mxu0 0.0
        %2222 = vmatpush1.msra.mxu0 %v2165
        %2223 = vmatprep.subr.mxu0 0.0
        %2224 = vmatpush1.msra.mxu0 %v2167
        %2225 = vmatprep.subr.mxu0 0.0
        %2226 = vmatpush1.msra.mxu0 %v2169
        %2227 = vmatprep.subr.mxu0 0.0
        %2228 = vmatpush1.msra.mxu0 %v2171
        %2229 = vmatprep.subr.mxu0 0.0
        %2230 = vmatpush1.msra.mxu0 %v2173
        %2231 = vmatprep.subr.mxu0 0.0
        %2232 = vmatpush1.msra.mxu0 %v2175
        %2233 = vmatprep.subr.mxu0 0.0
        %2234 = vmatpush1.msra.mxu0 %v2177
        %2235 = vmatprep.subr.mxu0 0.0
        %2236 = vmatpush1.msra.mxu0 %v2179
        %2237 = vmatprep.subr.mxu0 0.0
        %2238 = vmatpush1.msra.mxu0 %v2181
        %2239 = vmatprep.subr.mxu0 0.0
        %2240 = vmatpush1.msra.mxu0 %v2183
        %2241 = vmatprep.subr.mxu0 0.0
        %2242 = vmatpush1.msra.mxu0 %v2185
        %2243 = vmatprep.subr.mxu0 0.0
        %2244 = vmatpush1.msra.mxu0 %v2187
        %2245 = vmatprep.subr.mxu0 0.0
        %2246 = vmatpush1.msra.mxu0 %v2189
        %2247 = vmatprep.subr.mxu0 0.0
        %2248 = vmatpush1.msra.mxu0 %v2191
        %2249 = vmatprep.subr.mxu0 0.0
        %2250 = vmatpush1.msra.mxu0 %v2193
        %2251 = vmatprep.subr.mxu0 0.0
        %2252 = vmatpush1.msra.mxu0 %v2195
        %2253 = vmatprep.subr.mxu0 0.0
        %2254 = vmatpush1.msra.mxu0 0.0
        %2255 = vmatprep.subr.mxu0 0.0
        %2256 = vmatpush1.msra.mxu0 0.0
        %2257 = vmatprep.subr.mxu0 0.0
        %2258 = vmatpush1.msra.mxu0 0.0
        %2259 = vmatprep.subr.mxu0 0.0
        %2260 = vmatpush1.msra.mxu0 0.0
        %2261 = vmatprep.subr.mxu0 0.0
        %2262 = vmatpush1.msra.mxu0 0.0
        %2263 = vmatprep.subr.mxu0 0.0
        %2264 = vmatpush1.msra.mxu0 0.0
        %2265 = vmatprep.subr.mxu0 0.0
        %2266 = vmatpush1.msra.mxu0 0.0
        %2267 = vmatprep.subr.mxu0 0.0
        %2268 = vmatpush1.msra.mxu0 0.0
        %2269 = vmatprep.subr.mxu0 0.0
        %2270 = vmatpush1.msra.mxu0 0.0
        %2271 = vmatprep.subr.mxu0 0.0
        %2272 = vmatpush1.msra.mxu0 0.0
        %2273 = vmatprep.subr.mxu0 0.0
        %2274 = vmatpush1.msra.mxu0 0.0
        %2275 = vmatprep.subr.mxu0 0.0
        %2276 = vmatpush1.msra.mxu0 0.0
        %2277 = vmatprep.subr.mxu0 0.0
        %2278 = vmatpush1.msra.mxu0 0.0
        %2279 = vmatprep.subr.mxu0 0.0
        %2280 = vmatpush1.msra.mxu0 0.0
        %2281 = vmatprep.subr.mxu0 0.0
        %2282 = vmatpush1.msra.mxu0 0.0
        %2283 = vmatprep.subr.mxu0 0.0
        %2284 = vmatpush1.msra.mxu0 0.0
        %2285 = vmatprep.mubr.f32.mxu0 0.0
        %2286 = vmatmul.mubr.f32.gmra.mrb[0].mxu0 %v534
        %v2287 = vpop.f32.mrb[0].mxu0
        %v2288 = vadd.f32 0.0, %v2287
        %v2289 = vpop.f32.mrb[0].mxu0
        %2290 = vdwg.mxu0
        %v2292 = vlaneseq
        %v2293 = vshrl.u32 %v2292, 7
        %v2294 = vsub.s32 0, %v2293
        %v2295 = vrot.slane %v2141, %v2294
        %v2297 = vmul.f32 %v591, %v2295
        %v2298 = vadd.f32 %v2297, %v2288
        %2299 = vst [vmem:[#allocation2] sm:$0xff] %v1017
        %2300 = vst [vmem:[#allocation2 + $0x8] sm:$0xff] %v1444
        %2301 = vst [vmem:[#allocation2 + $0x10] sm:$0xff] %v1871
        %2302 = vst [vmem:[#allocation2 + $0x18] sm:$0xff] %v2298
        // Predicated region
        $region49: #{tpu_custom_call.1} parent=31 // pred_check
          %p2303 = pneg %p270
        $region50: #{tpu_custom_call.1} parent=31 // pred_check_branch
          %2305 = sbr.rel (%p2303) target = $region52
        $region51: #{tpu_custom_call.1} parent=31 // pred_region
          %v2306 = vld [vmem:[#allocation4] sm:$0x1]
          %v2307 = vld [vmem:[#allocation4 + $0x1] sm:$0x1]
          %v2308 = vld [vmem:[#allocation4 + $0x2] sm:$0x1]
          %v2309 = vld [vmem:[#allocation4 + $0x3] sm:$0x1]
          %v2310 = vrcp.pop %v2306
          %v2311 = vrcp.pop %v2307
          %v2312 = vrcp.pop %v2308
          %v2313 = vrcp.pop %v2309
          %v2314 = vld [vmem:[#allocation2] sm:$0xff]
          %v2316 = vlaneseq
          %v2317 = vshrl.u32 %v2316, 7
          %v2318 = vsub.s32 0, %v2317
          %v2319 = vrot.slane %v2310, %v2318
          %v2321 = vmul.f32 %v2314, %v2319
          %v2322 = vld [vmem:[#allocation2 + $0x8] sm:$0xff]
          %v2324 = vlaneseq
          %v2325 = vshrl.u32 %v2324, 7
          %v2326 = vsub.s32 0, %v2325
          %v2327 = vrot.slane %v2311, %v2326
          %v2329 = vmul.f32 %v2322, %v2327
          %v2330 = vld [vmem:[#allocation2 + $0x10] sm:$0xff]
          %v2332 = vlaneseq
          %v2333 = vshrl.u32 %v2332, 7
          %v2334 = vsub.s32 0, %v2333
          %v2335 = vrot.slane %v2312, %v2334
          %v2337 = vmul.f32 %v2330, %v2335
          %v2338 = vld [vmem:[#allocation2 + $0x18] sm:$0xff]
          %v2340 = vlaneseq
          %v2341 = vshrl.u32 %v2340, 7
          %v2342 = vsub.s32 0, %v2341
          %v2343 = vrot.slane %v2313, %v2342
          %v2345 = vmul.f32 %v2338, %v2343
          %2346 = vst [vmem:[%s269] sm:$0xff] %v2321
          %2347 = vst [vmem:[%s269 + $0x8] sm:$0xff] %v2329
          %2348 = vst [vmem:[%s269 + $0x10] sm:$0xff] %v2337
          %2349 = vst [vmem:[%s269 + $0x18] sm:$0xff] %v2345
        $region52: #{tpu_custom_call.1} parent=31 // pred_fallthru
          _
        %s2350 = sand.u32 %s129, 1
        %s2351 = scalar_lea.sflag [#allocation7], %s2350
        %s2352 = sand.u32 %s129, 1
        %s2353 = smul.addr %s2352, 32
        %s2354 = scalar_lea.vmem [#allocation11], %s2353
        // Predicated region
        $region53: #{tpu_custom_call.1} parent=31 // pred_check
          %p2355 = pneg %p139
        $region54: #{tpu_custom_call.1} parent=31 // pred_check_branch
          %2357 = sbr.rel (%p2355) target = $region56
        $region55: #{tpu_custom_call.1} parent=31 // pred_region
          %s2359 = ssub.s32 512, 512
          %2360 = vsyncadd %s2351, %s2359
          %s2361 = smul.addr %s28, 4
          %s2362 = sadd.s32 %s29, %s2361
          %s2363 = smul.addr %s2362, 128
          %s2364 = scalar_lea.hbm %s3, %s2363
          %s2365 = sshll.u32 %s2354, 4
          %s2366 = int_to_ptr.vmem [resolvable:$true] %s2365
          %2371 = dma.vmem_to_hbm [thread:$0]  %s2366, 512, %s2364, %s2351, 128, 128, 8
        $region56: #{tpu_custom_call.1} parent=31 // pred_fallthru
          _
      $region32: #{tpu_custom_call.1} parent=5 // pred_fallthru
        _
      %p2372 = scmp.le.s32.totalorder 2, %s18
      // Predicated region
      $region57: #{tpu_custom_call.1} parent=5 // pred_check
        %p2373 = pneg %p2372
      $region58: #{tpu_custom_call.1} parent=5 // pred_check_branch
        %2375 = sbr.rel (%p2373) target = $region60
      $region59: #{tpu_custom_call.1} parent=5 // pred_region
        %s2376 = ssub.s32 %s18, 2
        // Predicated region
        $region61: #{tpu_custom_call.1} parent=59 // pred_check
          %p2377 = pneg %p145
        $region62: #{tpu_custom_call.1} parent=59 // pred_check_branch
          %2379 = sbr.rel (%p2377) target = $region64
        $region63: #{tpu_custom_call.1} parent=59 // pred_region
          %s2380 = sand.u32 %s130, 1
          %s2381 = scalar_lea.sflag [#allocation7], %s2380
          %s2382 = sand.u32 %s130, 1
          %s2383 = smul.addr %s2382, 32
          %s2384 = scalar_lea.vmem [#allocation11], %s2383
          %2385 = dma.done %s2381, 512
        $region64: #{tpu_custom_call.1} parent=59 // pred_fallthru
          _
      $region60: #{tpu_custom_call.1} parent=5 // pred_fallthru
        _
    $region6: #{tpu_custom_call.1} parent=1 // loop_footer
      %s22 = sadd.s32 1, %s18
    $region7: #{tpu_custom_call.1} parent=1 // loop_footer_branch
      %17 = sbr.rel target = $region3
    $region8: #{tpu_custom_call.1} parent=1 // loop_exit
      _
    %2386 = vsyncpa [#allocation6], 1
    %s2387 = scalar_lea.sflag [#allocation6], 1
    %2388 = vsyncpa %s2387, 1
    %2389 = vsyncpa [#allocation9], 1
    %s2390 = scalar_lea.sflag [#allocation9], 1
    %2391 = vsyncpa %s2390, 1
    %2392 = vsyncpa [#allocation7], 1
    %s2393 = scalar_lea.sflag [#allocation7], 1
    %2394 = vsyncpa %s2393, 1

</llo_original>
